<compile_context>
chip_gen: v7x
topology: tpu7x:2x2x1
jax: 0.10.0
libtpu: 0.0.40
codegen_flags: <defaults>
</compile_context>

<pallas_src>
import functools

import jax
import jax.numpy as jnp
from jax import lax
from jax.experimental import pallas as pl
from jax.experimental.pallas import tpu as pltpu

# ----------------------------- configuration ------------------------------
NUM_EMBEDDINGS = 32      # K
EMBEDDING_DIM = 16       # D  (== channel dim C of the NCHW input)
COMMITMENT_COST = 0.25
DECAY = 0.99             # unused in eval-mode forward
EPSILON = 1e-5           # unused in eval-mode forward


# ------------------------------- the kernel -------------------------------
def _vq_kernel(chunk, x_ref, e_ref, et_ref, e2h_ref,
               quant_ref, idx_ref, cnt_ref, sse_ref):
    # x_ref:     (D, TM)    input tile, H*W on the lane axis
    # e_ref:     (K, D)     codebook (grid-invariant, resident in VMEM)
    # et_ref:    (D, K)     codebook transposed (resident)
    # e2h_ref:   (K, 1)     0.5 * ||e_k||^2 (resident)
    # quant_ref: (D, TM)    quantized outputs
    # idx_ref:   (1, TM)    int32 code indices
    # cnt_ref:   (1, K, 1)  per-tile code-usage counts
    # sse_ref:   (1, 1, 1)  per-tile sum of squared (quant - x)
    e = e_ref[...]                                       # (K, D) f32
    et = et_ref[...]                                     # (D, K) f32
    e2h = e2h_ref[...]                                   # (K, 1) f32
    K = e.shape[0]
    TM = x_ref.shape[1]
    n_chunks = TM // chunk

    # hoisted broadcast iota (reused by every chunk)
    row = lax.broadcasted_iota(jnp.int32, (K, chunk), 0)

    cnt = jnp.zeros((K, 1), jnp.float32)
    sse = jnp.float32(0.0)

    # Compute in <=512-lane slabs so the (K, chunk) temporaries (dist, enc_t,
    # iota) fit in the 64-vreg file; the DMA tile stays the full TM block.
    for c in range(n_chunks):                            # static, fully unrolled
        off = c * chunk
        xt = x_ref[:, pl.ds(off, chunk)].astype(jnp.float32)          # (D, C)

        # argmin_k ||x - e_k||^2  ==  argmin_k (0.5*||e_k||^2 - e_k . x)
        ex = jnp.dot(e, xt, preferred_element_type=jnp.float32)       # (K, C)
        dist = e2h - ex                                                # (K, C)

        # argmin over K (sublanes); first occurrence on ties (torch.argmin)
        min_d = jnp.min(dist, axis=0, keepdims=True)                   # (1, C)
        idx = jnp.min(jnp.where(dist == min_d, row, K),
                      axis=0, keepdims=True)                           # (1, C)

        # one-hot (VMEM only, never written to HBM) and quantized vectors
        enc_t = (row == idx).astype(jnp.float32)                       # (K, C)
        quant_t = jnp.dot(et, enc_t,
                          preferred_element_type=jnp.float32)          # (D, C)
        diff = quant_t - xt

        quant_ref[:, pl.ds(off, chunk)] = quant_t.astype(quant_ref.dtype)
        idx_ref[:, pl.ds(off, chunk)] = idx.astype(jnp.int32)

        # tiny per-tile partial statistics (reduced in the wrapper)
        cnt = cnt + jnp.sum(enc_t, axis=1, keepdims=True)              # (K, 1)
        sse = sse + jnp.sum(diff * diff)

    cnt_ref[...] = jnp.reshape(cnt, (1, K, 1))
    sse_ref[...] = jnp.reshape(sse, (1, 1, 1))


# ------------------------------ tile picking -------------------------------
def _pick_tile_hw(hw, batch, max_tile=2048, min_steps=8):
    """Power-of-two lane tile along H*W: large enough to amortize the ~0.35us
    per-grid-step overhead, small enough that the (batch, hw//TM) grid has at
    least `min_steps` steps for pipelining and the 2-TensorCore split."""
    cap = min(max_tile, max(128, (batch * hw) // min_steps))
    tm = 1
    while tm * 2 <= min(cap, hw) and hw % (tm * 2) == 0:
        tm *= 2
    return tm


# ------------------------------- the wrapper -------------------------------
def vector_quantizer_ema_forward(inputs_nchw, embedding_weight, *,
                                 commitment_cost=COMMITMENT_COST,
                                 tile_hw=None, io_dtype=jnp.float32,
                                 return_encodings=False):
    """inputs_nchw: (B, C=D, H, W); embedding_weight: (K, D) float32.

    Returns (loss, quantized_nchw, perplexity, codes) matching the eval-mode
    forward of the PyTorch module.  `codes` is the int32 index vector (M,) by
    default; pass return_encodings=True to get the (M, K) f32 one-hot instead
    (costs an extra M*K*4-byte HBM write).
    """
    B, C, H, W = inputs_nchw.shape
    K, D = embedding_weight.shape
    assert C == D, "channel dim must equal embedding_dim"
    HW = H * W
    M = B * HW

    TM = _pick_tile_hw(HW, B) if tile_hw is None else int(tile_hw)
    assert HW % TM == 0, "tile_hw must divide H*W"
    G = HW // TM
    chunk = 512 if (TM % 512 == 0 and TM > 512) else TM   # in-kernel slab

    e = embedding_weight.astype(jnp.float32)
    et = jnp.transpose(e)                                  # (D, K), tiny
    e2h = 0.5 * jnp.sum(e * e, axis=1, keepdims=True)      # (K, 1), tiny

    # Free reshape (C is already axis 1 of NCHW) — no XLA transpose pass.
    x_bdm = jnp.reshape(inputs_nchw, (B, D, HW)).astype(io_dtype)

    kernel = functools.partial(_vq_kernel, chunk)

    quant_bdm, idx_b1m, cnt_part, sse_part = pl.pallas_call(
        kernel,
        out_shape=(
            jax.ShapeDtypeStruct((B, D, HW), io_dtype),    # quantized
            jax.ShapeDtypeStruct((B, 1, HW), jnp.int32),   # code indices
            jax.ShapeDtypeStruct((B, G, K, 1), jnp.float32),  # per-tile counts
            jax.ShapeDtypeStruct((B, G, 1, 1), jnp.float32),  # per-tile SSE
        ),
        grid=(B, G),
        in_specs=[
            pl.BlockSpec((None, D, TM), lambda b, i: (b, 0, i)),  # x (pipelined)
            pl.BlockSpec((K, D), lambda b, i: (0, 0)),            # codebook
            pl.BlockSpec((D, K), lambda b, i: (0, 0)),            # codebook^T
            pl.BlockSpec((K, 1), lambda b, i: (0, 0)),            # 0.5*||e||^2
        ],
        out_specs=(
            pl.BlockSpec((None, D, TM), lambda b, i: (b, 0, i)),
            pl.BlockSpec((None, 1, TM), lambda b, i: (b, 0, i)),
            pl.BlockSpec((None, 1, K, 1), lambda b, i: (b, i, 0, 0)),
            pl.BlockSpec((None, 1, 1, 1), lambda b, i: (b, i, 0, 0)),
        ),
        compiler_params=pltpu.CompilerParams(
            dimension_semantics=("parallel", "parallel"),  # megacore split
            vmem_limit_bytes=32 * 1024 * 1024,             # safe on v5e/v6e/v7x
        ),
    )(x_bdm, e, et, e2h)

    # tiny scalar reductions over the per-tile partials (plain JAX)
    sse_total = jnp.sum(sse_part)
    counts = jnp.reshape(jnp.sum(cnt_part, axis=(0, 1)), (K,))
    e_latent_loss = sse_total / jnp.float32(M * D)
    loss = jnp.float32(commitment_cost) * e_latent_loss
    avg_probs = counts / jnp.float32(M)
    perplexity = jnp.exp(-jnp.sum(avg_probs * jnp.log(avg_probs + 1e-10)))

    # row order b*H*W + h*W + w — identical to the PyTorch flattening
    indices = jnp.reshape(idx_b1m, (M,))
    quant_nchw = jnp.reshape(quant_bdm, (B, D, H, W))      # free reshape

    if return_encodings:
        # strict API parity with the PyTorch module (costly M*K f32 HBM write)
        codes = jax.nn.one_hot(indices, K, dtype=jnp.float32)
    else:
        codes = indices
    return loss, quant_nchw, perplexity, codes


# --------------------------------- main ------------------------------------
if __name__ == "__main__":
    key = jax.random.PRNGKey(0)
    k_emb, k_emaw, k_x = jax.random.split(key, 3)

    # Deterministic "normal_()" parameter init (shapes from __init__).
    embedding_weight = jax.random.normal(
        k_emb, (NUM_EMBEDDINGS, EMBEDDING_DIM), dtype=jnp.float32)
    _ema_w = jax.random.normal(                       # present in the module,
        k_emaw, (NUM_EMBEDDINGS, EMBEDDING_DIM),      # unused in eval forward
        dtype=jnp.float32)
    _ema_cluster_size = jnp.zeros((NUM_EMBEDDINGS,), dtype=jnp.float32)

    # Small NCHW input: HW = 4096 -> TM = 1024, grid (2, 4), 2 inner chunks.
    B, H, W = 2, 64, 64
    x = jax.random.normal(k_x, (B, EMBEDDING_DIM, H, W), dtype=jnp.float32)

    loss, quantized, perplexity, indices = vector_quantizer_ema_forward(
        x, embedding_weight)
    jax.block_until_ready((loss, quantized, perplexity, indices))

    # ----- correctness checks (tolerant to MXU-precision argmin tie flips) ---
    M = B * H * W
    K = NUM_EMBEDDINGS
    assert indices.shape == (M,) and indices.dtype == jnp.int32
    idx_k = indices
    assert bool(jnp.all((idx_k >= 0) & (idx_k < K)))

    flat = jnp.reshape(jnp.transpose(x, (0, 2, 3, 1)), (M, EMBEDDING_DIM))
    d_ref = (jnp.sum(flat ** 2, 1, keepdims=True)
             + jnp.sum(embedding_weight ** 2, 1)
             - 2.0 * jnp.matmul(flat, embedding_weight.T,
                                precision=jax.lax.Precision.HIGHEST))

    # 1) selected codes are (numerically) distance-optimal
    chosen_d = jnp.take_along_axis(d_ref, idx_k[:, None], axis=1)[:, 0]
    assert bool(jnp.all(chosen_d <= jnp.min(d_ref, axis=1) + 0.5)), \
        "argmin not optimal"
    # 2) quantized == selected codebook rows, correctly laid out as NCHW
    q_exp = jnp.transpose(
        jnp.reshape(embedding_weight[idx_k], (B, H, W, EMBEDDING_DIM)),
        (0, 3, 1, 2))
    assert bool(jnp.allclose(quantized, q_exp, atol=2e-2)), "quantized mismatch"
    # 3) commitment-loss wiring (against the kernel's own quantized output)
    loss_ref = COMMITMENT_COST * jnp.mean((quantized - x) ** 2)
    assert bool(jnp.allclose(loss, loss_ref, rtol=1e-4, atol=1e-6)), \
        "loss mismatch"
    # 4) perplexity / count wiring (against the returned indices)
    encodings = jax.nn.one_hot(idx_k, K, dtype=jnp.float32)   # test-only
    avg_ref = jnp.mean(encodings, axis=0)
    perp_ref = jnp.exp(-jnp.sum(avg_ref * jnp.log(avg_ref + 1e-10)))
    assert bool(jnp.allclose(perplexity, perp_ref, rtol=1e-5, atol=1e-6)), \
        "perplexity mismatch"

    print("KERNEL_OK")
</pallas_src>

<mosaic_0001>
module attributes {stable_mosaic.version = 11 : i64} {
  func.func @_vq_kernel(%arg0: i32, %arg1: i32, %arg2: memref<1x16x1024xf32, #tpu.memory_space<vmem>>, %arg3: memref<32x16xf32, #tpu.memory_space<vmem>>, %arg4: memref<16x32xf32, #tpu.memory_space<vmem>>, %arg5: memref<32x1xf32, #tpu.memory_space<vmem>>, %arg6: memref<1x16x1024xf32, #tpu.memory_space<vmem>>, %arg7: memref<1x1x1024xi32, #tpu.memory_space<vmem>>, %arg8: memref<1x1x32x1xf32, #tpu.memory_space<vmem>>, %arg9: memref<1x1x1x1xf32, #tpu.memory_space<vmem>>) attributes {dimension_semantics = [#tpu.dimension_semantics<parallel>, #tpu.dimension_semantics<parallel>], iteration_bounds = array<i64: 2, 4>, scalar_prefetch = 0 : i64, scratch_operands = 0 : i64, tpu.core_type = #tpu.core_type<tc>, window_params = [{transform_indices = @transform_0, window_bounds = array<i64: 1, 16, 1024>}, {pipeline_mode = #tpu.pipeline_mode<synchronous>, transform_indices = @transform_1, window_bounds = array<i64: 32, 16>}, {pipeline_mode = #tpu.pipeline_mode<synchronous>, transform_indices = @transform_2, window_bounds = array<i64: 16, 32>}, {pipeline_mode = #tpu.pipeline_mode<synchronous>, transform_indices = @transform_3, window_bounds = array<i64: 32, 1>}, {transform_indices = @transform_4, window_bounds = array<i64: 1, 16, 1024>}, {transform_indices = @transform_5, window_bounds = array<i64: 1, 1, 1024>}, {transform_indices = @transform_6, window_bounds = array<i64: 1, 1, 32, 1>}, {transform_indices = @transform_7, window_bounds = array<i64: 1, 1, 1, 1>}]} {
    %c0 = arith.constant 0 : index
    %c0_0 = arith.constant 0 : index
    %0 = vector.load %arg3[%c0, %c0_0] : memref<32x16xf32, #tpu.memory_space<vmem>>, vector<32x16xf32>
    %c0_1 = arith.constant 0 : index
    %c0_2 = arith.constant 0 : index
    %1 = vector.load %arg4[%c0_1, %c0_2] : memref<16x32xf32, #tpu.memory_space<vmem>>, vector<16x32xf32>
    %c0_3 = arith.constant 0 : index
    %c0_4 = arith.constant 0 : index
    %2 = vector.load %arg5[%c0_3, %c0_4] : memref<32x1xf32, #tpu.memory_space<vmem>>, vector<32x1xf32>
    %3 = tpu.iota {dimensions = array<i32: 0>} : vector<32x512xi32>
    %cst = arith.constant 0.000000e+00 : f32
    %4 = vector.broadcast %cst : f32 to vector<32x1xf32>
    %c0_5 = arith.constant 0 : index
    %c0_6 = arith.constant 0 : index
    %c0_7 = arith.constant 0 : index
    %5 = vector.load %arg2[%c0_5, %c0_6, %c0_7] : memref<1x16x1024xf32, #tpu.memory_space<vmem>>, vector<1x16x512xf32>
    %6 = vector.shape_cast %5 : vector<1x16x512xf32> to vector<16x512xf32>
    %cst_8 = arith.constant dense<0.000000e+00> : vector<32x512xf32>
    %7 = tpu.matmul %0, %6, %cst_8 {dimension_numbers = #tpu.dot_dimension_numbers<[1], [0], [0], [1], [0, 0, 1, 1], [], []>} : vector<32x16xf32>, vector<16x512xf32>, vector<32x512xf32> -> vector<32x512xf32>
    %8 = vector.broadcast %2 : vector<32x1xf32> to vector<32x512xf32>
    %9 = arith.subf %8, %7 : vector<32x512xf32>
    %cst_9 = arith.constant dense<0x7F800000> : vector<512xf32>
    %10 = vector.multi_reduction <minimumf>, %9, %cst_9 [0] : vector<32x512xf32> to vector<512xf32>
    %11 = vector.shape_cast %10 : vector<512xf32> to vector<1x512xf32>
    %12 = vector.broadcast %11 : vector<1x512xf32> to vector<32x512xf32>
    %13 = arith.cmpf oeq, %9, %12 : vector<32x512xf32>
    %c32_i32 = arith.constant 32 : i32
    %14 = vector.broadcast %c32_i32 : i32 to vector<32x512xi32>
    %15 = arith.select %13, %3, %14 : vector<32x512xi1>, vector<32x512xi32>
    %cst_10 = arith.constant dense<2147483647> : vector<512xi32>
    %16 = vector.multi_reduction <minsi>, %15, %cst_10 [0] : vector<32x512xi32> to vector<512xi32>
    %17 = vector.shape_cast %16 : vector<512xi32> to vector<1x512xi32>
    %18 = vector.broadcast %17 : vector<1x512xi32> to vector<32x512xi32>
    %19 = arith.cmpi eq, %3, %18 : vector<32x512xi32>
    %20 = arith.extui %19 : vector<32x512xi1> to vector<32x512xi32>
    %21 = arith.sitofp %20 : vector<32x512xi32> to vector<32x512xf32>
    %cst_11 = arith.constant dense<0.000000e+00> : vector<16x512xf32>
    %22 = tpu.matmul %1, %21, %cst_11 {dimension_numbers = #tpu.dot_dimension_numbers<[1], [0], [0], [1], [0, 0, 1, 1], [], []>} : vector<16x32xf32>, vector<32x512xf32>, vector<16x512xf32> -> vector<16x512xf32>
    %23 = arith.subf %22, %6 : vector<16x512xf32>
    %c0_12 = arith.constant 0 : index
    %c0_13 = arith.constant 0 : index
    %c0_14 = arith.constant 0 : index
    %24 = vector.load %arg6[%c0_12, %c0_13, %c0_14] : memref<1x16x1024xf32, #tpu.memory_space<vmem>>, vector<1x16x512xf32>
    %25 = vector.shape_cast %24 : vector<1x16x512xf32> to vector<16x512xf32>
    %26 = vector.shape_cast %22 : vector<16x512xf32> to vector<1x16x512xf32>
    tpu.vector_store %arg6[%c0_12, %c0_13, %c0_14], %26 {strides = array<i32>} : memref<1x16x1024xf32, #tpu.memory_space<vmem>>, vector<1x16x512xf32>,
    %c0_15 = arith.constant 0 : index
    %c0_16 = arith.constant 0 : index
    %c0_17 = arith.constant 0 : index
    %27 = vector.load %arg7[%c0_15, %c0_16, %c0_17] : memref<1x1x1024xi32, #tpu.memory_space<vmem>>, vector<1x1x512xi32>
    %28 = vector.shape_cast %27 : vector<1x1x512xi32> to vector<1x512xi32>
    %29 = vector.shape_cast %17 : vector<1x512xi32> to vector<1x1x512xi32>
    tpu.vector_store %arg7[%c0_15, %c0_16, %c0_17], %29 {strides = array<i32>} : memref<1x1x1024xi32, #tpu.memory_space<vmem>>, vector<1x1x512xi32>,
    %cst_18 = arith.constant dense<0.000000e+00> : vector<32xf32>
    %30 = vector.multi_reduction <add>, %21, %cst_18 [1] : vector<32x512xf32> to vector<32xf32>
    %31 = vector.shape_cast %30 : vector<32xf32> to vector<32x1xf32>
    %32 = arith.addf %4, %31 : vector<32x1xf32>
    %33 = arith.mulf %23, %23 : vector<16x512xf32>
    %34 = vector.shape_cast %33 : vector<16x512xf32> to vector<1x16x512xf32>
    %cst_19 = arith.constant dense<0.000000e+00> : vector<1xf32>
    %35 = vector.multi_reduction <add>, %34, %cst_19 [1, 2] : vector<1x16x512xf32> to vector<1xf32>
    %36 = vector.shape_cast %35 : vector<1xf32> to vector<1x1x1xf32>
    %37 = vector.extract %36[0, 0, 0] : f32 from vector<1x1x1xf32>
    %cst_20 = arith.constant 0.000000e+00 : f32
    %38 = arith.addf %cst_20, %37 : f32
    %c0_21 = arith.constant 0 : index
    %c0_22 = arith.constant 0 : index
    %c512 = arith.constant 512 : index
    %39 = vector.load %arg2[%c0_21, %c0_22, %c512] : memref<1x16x1024xf32, #tpu.memory_space<vmem>>, vector<1x16x512xf32>
    %40 = vector.shape_cast %39 : vector<1x16x512xf32> to vector<16x512xf32>
    %cst_23 = arith.constant dense<0.000000e+00> : vector<32x512xf32>
    %41 = tpu.matmul %0, %40, %cst_23 {dimension_numbers = #tpu.dot_dimension_numbers<[1], [0], [0], [1], [0, 0, 1, 1], [], []>} : vector<32x16xf32>, vector<16x512xf32>, vector<32x512xf32> -> vector<32x512xf32>
    %42 = vector.broadcast %2 : vector<32x1xf32> to vector<32x512xf32>
    %43 = arith.subf %42, %41 : vector<32x512xf32>
    %cst_24 = arith.constant dense<0x7F800000> : vector<512xf32>
    %44 = vector.multi_reduction <minimumf>, %43, %cst_24 [0] : vector<32x512xf32> to vector<512xf32>
    %45 = vector.shape_cast %44 : vector<512xf32> to vector<1x512xf32>
    %46 = vector.broadcast %45 : vector<1x512xf32> to vector<32x512xf32>
    %47 = arith.cmpf oeq, %43, %46 : vector<32x512xf32>
    %c32_i32_25 = arith.constant 32 : i32
    %48 = vector.broadcast %c32_i32_25 : i32 to vector<32x512xi32>
    %49 = arith.select %47, %3, %48 : vector<32x512xi1>, vector<32x512xi32>
    %cst_26 = arith.constant dense<2147483647> : vector<512xi32>
    %50 = vector.multi_reduction <minsi>, %49, %cst_26 [0] : vector<32x512xi32> to vector<512xi32>
    %51 = vector.shape_cast %50 : vector<512xi32> to vector<1x512xi32>
    %52 = vector.broadcast %51 : vector<1x512xi32> to vector<32x512xi32>
    %53 = arith.cmpi eq, %3, %52 : vector<32x512xi32>
    %54 = arith.extui %53 : vector<32x512xi1> to vector<32x512xi32>
    %55 = arith.sitofp %54 : vector<32x512xi32> to vector<32x512xf32>
    %cst_27 = arith.constant dense<0.000000e+00> : vector<16x512xf32>
    %56 = tpu.matmul %1, %55, %cst_27 {dimension_numbers = #tpu.dot_dimension_numbers<[1], [0], [0], [1], [0, 0, 1, 1], [], []>} : vector<16x32xf32>, vector<32x512xf32>, vector<16x512xf32> -> vector<16x512xf32>
    %57 = arith.subf %56, %40 : vector<16x512xf32>
    %c0_28 = arith.constant 0 : index
    %c0_29 = arith.constant 0 : index
    %c512_30 = arith.constant 512 : index
    %58 = vector.load %arg6[%c0_28, %c0_29, %c512_30] : memref<1x16x1024xf32, #tpu.memory_space<vmem>>, vector<1x16x512xf32>
    %59 = vector.shape_cast %58 : vector<1x16x512xf32> to vector<16x512xf32>
    %60 = vector.shape_cast %56 : vector<16x512xf32> to vector<1x16x512xf32>
    tpu.vector_store %arg6[%c0_28, %c0_29, %c512_30], %60 {strides = array<i32>} : memref<1x16x1024xf32, #tpu.memory_space<vmem>>, vector<1x16x512xf32>,
    %c0_31 = arith.constant 0 : index
    %c0_32 = arith.constant 0 : index
    %c512_33 = arith.constant 512 : index
    %61 = vector.load %arg7[%c0_31, %c0_32, %c512_33] : memref<1x1x1024xi32, #tpu.memory_space<vmem>>, vector<1x1x512xi32>
    %62 = vector.shape_cast %61 : vector<1x1x512xi32> to vector<1x512xi32>
    %63 = vector.shape_cast %51 : vector<1x512xi32> to vector<1x1x512xi32>
    tpu.vector_store %arg7[%c0_31, %c0_32, %c512_33], %63 {strides = array<i32>} : memref<1x1x1024xi32, #tpu.memory_space<vmem>>, vector<1x1x512xi32>,
    %cst_34 = arith.constant dense<0.000000e+00> : vector<32xf32>
    %64 = vector.multi_reduction <add>, %55, %cst_34 [1] : vector<32x512xf32> to vector<32xf32>
    %65 = vector.shape_cast %64 : vector<32xf32> to vector<32x1xf32>
    %66 = arith.addf %32, %65 : vector<32x1xf32>
    %67 = arith.mulf %57, %57 : vector<16x512xf32>
    %68 = vector.shape_cast %67 : vector<16x512xf32> to vector<1x16x512xf32>
    %cst_35 = arith.constant dense<0.000000e+00> : vector<1xf32>
    %69 = vector.multi_reduction <add>, %68, %cst_35 [1, 2] : vector<1x16x512xf32> to vector<1xf32>
    %70 = vector.shape_cast %69 : vector<1xf32> to vector<1x1x1xf32>
    %71 = vector.extract %70[0, 0, 0] : f32 from vector<1x1x1xf32>
    %72 = arith.addf %38, %71 : f32
    %73 = vector.shape_cast %66 : vector<32x1xf32> to vector<1x32x1xf32>
    %c0_36 = arith.constant 0 : index
    %c0_37 = arith.constant 0 : index
    %c0_38 = arith.constant 0 : index
    %c0_39 = arith.constant 0 : index
    %74 = vector.load %arg8[%c0_36, %c0_37, %c0_38, %c0_39] : memref<1x1x32x1xf32, #tpu.memory_space<vmem>>, vector<1x1x32x1xf32>
    %75 = vector.shape_cast %74 : vector<1x1x32x1xf32> to vector<1x32x1xf32>
    %76 = vector.shape_cast %73 : vector<1x32x1xf32> to vector<1x1x32x1xf32>
    tpu.vector_store %arg8[%c0_36, %c0_37, %c0_38, %c0_39], %76 {strides = array<i32>} : memref<1x1x32x1xf32, #tpu.memory_space<vmem>>, vector<1x1x32x1xf32>,
    %77 = vector.broadcast %72 : f32 to vector<1x1x1xf32>
    %c0_40 = arith.constant 0 : index
    %c0_41 = arith.constant 0 : index
    %c0_42 = arith.constant 0 : index
    %c0_43 = arith.constant 0 : index
    %78 = vector.load %arg9[%c0_40, %c0_41, %c0_42, %c0_43] : memref<1x1x1x1xf32, #tpu.memory_space<vmem>>, vector<1x1x1x1xf32>
    %79 = vector.shape_cast %78 : vector<1x1x1x1xf32> to vector<1x1x1xf32>
    %80 = vector.shape_cast %77 : vector<1x1x1xf32> to vector<1x1x1x1xf32>
    tpu.vector_store %arg9[%c0_40, %c0_41, %c0_42, %c0_43], %80 {strides = array<i32>} : memref<1x1x1x1xf32, #tpu.memory_space<vmem>>, vector<1x1x1x1xf32>,
    return
  }
  func.func @transform_0(%arg0: i32, %arg1: i32) -> (i32, i32, i32) {
    %c0_i32 = arith.constant 0 : i32
    %c0_i32_0 = arith.constant 0 : i32
    return %arg0, %c0_i32, %arg1 : i32, i32, i32
  }
  func.func @transform_1(%arg0: i32, %arg1: i32) -> (i32, i32) {
    %c0_i32 = arith.constant 0 : i32
    %c0_i32_0 = arith.constant 0 : i32
    %c0_i32_1 = arith.constant 0 : i32
    return %c0_i32, %c0_i32_0 : i32, i32
  }
  func.func @transform_2(%arg0: i32, %arg1: i32) -> (i32, i32) {
    %c0_i32 = arith.constant 0 : i32
    %c0_i32_0 = arith.constant 0 : i32
    %c0_i32_1 = arith.constant 0 : i32
    return %c0_i32, %c0_i32_0 : i32, i32
  }
  func.func @transform_3(%arg0: i32, %arg1: i32) -> (i32, i32) {
    %c0_i32 = arith.constant 0 : i32
    %c0_i32_0 = arith.constant 0 : i32
    %c0_i32_1 = arith.constant 0 : i32
    return %c0_i32, %c0_i32_0 : i32, i32
  }
  func.func @transform_4(%arg0: i32, %arg1: i32) -> (i32, i32, i32) {
    %c0_i32 = arith.constant 0 : i32
    %c0_i32_0 = arith.constant 0 : i32
    return %arg0, %c0_i32, %arg1 : i32, i32, i32
  }
  func.func @transform_5(%arg0: i32, %arg1: i32) -> (i32, i32, i32) {
    %c0_i32 = arith.constant 0 : i32
    %c0_i32_0 = arith.constant 0 : i32
    return %arg0, %c0_i32, %arg1 : i32, i32, i32
  }
  func.func @transform_6(%arg0: i32, %arg1: i32) -> (i32, i32, i32, i32) {
    %c0_i32 = arith.constant 0 : i32
    %c0_i32_0 = arith.constant 0 : i32
    %c0_i32_1 = arith.constant 0 : i32
    return %arg0, %arg1, %c0_i32, %c0_i32_0 : i32, i32, i32, i32
  }
  func.func @transform_7(%arg0: i32, %arg1: i32) -> (i32, i32, i32, i32) {
    %c0_i32 = arith.constant 0 : i32
    %c0_i32_0 = arith.constant 0 : i32
    %c0_i32_1 = arith.constant 0 : i32
    return %arg0, %arg1, %c0_i32, %c0_i32_0 : i32, i32, i32, i32
  }
}

</mosaic_0001>

<llo_original>
// kernel: tpu_custom_call.1
$region0: #{tpu_custom_call.1}
  #allocation0 [shape = 'u32[]', space=smem, size = 0x4, offset = 0x4, fixed_abs, tag = 'smem constant byte address 0x4 - core index']
  #allocation1 [shape = 'u32[144,128]{1,0:T(1,128)}', space=vmem, size = 0x12000, scoped, tag = 'internal scratch']
  %s0 = inlined_call_operand.hbm [shape: f32[2,16,4096], index: 0, kind: input, shape index: {}]
  %s1 = inlined_call_operand.vmem [shape: f32[32,16], index: 1, kind: input, shape index: {}]
  %s2 = inlined_call_operand.vmem [shape: f32[16,32], index: 2, kind: input, shape index: {}]
  %s3 = inlined_call_operand.vmem [shape: f32[32,1], index: 3, kind: input, shape index: {}]
  %s4 = inlined_call_operand.hbm [shape: f32[2,16,4096], index: 4, kind: output, shape index: {0}]
  %s5 = inlined_call_operand.hbm [shape: s32[2,1,4096], index: 5, kind: output, shape index: {1}]
  %s6 = inlined_call_operand.vmem [shape: f32[2,4,32,1], index: 6, kind: output, shape index: {2}]
  %s7 = inlined_call_operand.vmem [shape: f32[2,4,1,1], index: 7, kind: output, shape index: {3}]
  %8 = xla_tuple %s4, %s5, %s6, %s7
  %s9 = sld [smem:[#allocation0]]
  $region77: #{tpu_custom_call.1} parent=0
    _
  %s11 = ssub.s32 1, %s9
  %s12 = scalar_select 0, %s11, %s9
  $region1: #{tpu_custom_call.1} parent=0
    #allocation2 [shape = 'u8[131072]{0}', space=vmem, size = 0x20000, scoped, tag = 'input window, operand 0']
    #allocation3 [shape = 's32[2]{0}', space=sflag, size = 0x8, scoped, tag = 'scoped memory for tpu_custom_call.1']
    #allocation4 [shape = 's32[2]{0}', space=sflag, size = 0x8, scoped, tag = 'scoped memory for tpu_custom_call.1']
    #allocation5 [shape = 'u8[131072]{0}', space=vmem, size = 0x20000, scoped, tag = 'output window, operand 0']
    #allocation6 [shape = 'u8[8192]{0}', space=vmem, size = 0x2000, scoped, tag = 'output window, operand 1']
    #allocation7 [shape = 's32[2]{0}', space=sflag, size = 0x8, scoped, tag = 'scoped memory for tpu_custom_call.1']
    %13 = vsyncpa [#allocation3], 0
    %s14 = scalar_lea.sflag [#allocation3], 1
    %15 = vsyncpa %s14, 0
    %16 = vsyncpa [#allocation4], 0
    %s17 = scalar_lea.sflag [#allocation4], 1
    %18 = vsyncpa %s17, 0
    %19 = vsyncpa [#allocation7], 0
    %s20 = scalar_lea.sflag [#allocation7], 1
    %21 = vsyncpa %s20, 0
    loop: start=0, step=1, limit=10
    $region2: #{tpu_custom_call.1} parent=1 // loop_pre_header
      _
    $region3: #{tpu_custom_call.1} parent=1 // loop_header
      %s23 = sphi 0, %s27
      %p24 = scmp.ge.s32.totalorder %s23, 10
      %s30 = sphi 0, %s42
      %s31 = sphi 0, %s38
      %s32 = sphi 0, %s30
      %s33 = sphi 0, %s31
      %s34 = sphi 0, %s32
      %s35 = sphi 0, %s33
      %s47 = sphi 0, %s49
      %s50 = sphi 0, %s47
      %s51 = sphi 0, %s50
      %s67 = sphi 0, %s51
      %s71 = sphi 0, %s71
      %s73 = sphi 0, %s71
      %s74 = sphi 0, %s73
      %s88 = sphi 0, %s74
      %s92 = sphi 0, %s92
      %s94 = sphi 0, %s92
      %s95 = sphi 0, %s94
      %s109 = sphi 0, %s95
      %s113 = sphi 0, %s113
      %s115 = sphi 0, %s113
      %s116 = sphi 0, %s115
      %s130 = sphi 0, %s116
      %s138 = sphi 0, %s140
      %s141 = sphi 0, %s138
      %s142 = sphi 0, %s141
      %s158 = sphi 0, %s142
      %s166 = sphi 0, %s168
      %s169 = sphi 0, %s166
      %s170 = sphi 0, %s169
      %s186 = sphi 0, %s170
      %s194 = sphi 0, %s196
      %s197 = sphi 0, %s194
      %s198 = sphi 0, %s197
      %s214 = sphi 0, %s198
      %s222 = sphi 0, %s224
      %s225 = sphi 0, %s222
      %s226 = sphi 0, %s225
      %s242 = sphi 0, %s226
    $region4: #{tpu_custom_call.1} parent=1 // loop_header_branch
      %26 = sbr.rel (%p24) target = $region8
    $region5: #{tpu_custom_call.1} parent=1 // loop_body
      %s28 = ssub.s32 %s23, 1
      %s29 = ssub.s32 %s23, 2
      %s36 = sadd.s32 1, %s31
      %p37 = scmp.ge.s32.totalorder %s36, 4
      %s38 = scalar_select %p37, 0, %s36
      %s39 = sadd.s32 1, %s30
      %s40 = scalar_select %p37, %s39, %s30
      %p41 = scmp.ge.s32.totalorder %s40, 2
      %s42 = scalar_select %p41, 0, %s40
      %s43 = ssub.s32 %s30, %s42
      %s44 = ssub.s32 %s31, %s38
      %s45 = sor.u32 %s43, %s44
      %p46 = scmp.eq.s32.totalorder %s45, 0
      %s48 = sadd.s32 %s47, 1
      %s49 = scalar_select %p46, %s47, %s48
      %p52 = pneg %p46
      %p53 = scmp.eq.s32.totalorder %s23, 7
      %p54 = por %p52, %p53
      %p55 = scmp.ne.s32.totalorder %s47, %s50
      %p56 = scmp.eq.s32.totalorder %s23, 0
      %p57 = por %p55, %p56
      %p58 = scmp.ne.s32.totalorder %s47, %s50
      %p59 = scmp.eq.s32.totalorder %s28, 7
      %p60 = por %p58, %p59
      %p61 = scmp.ne.s32.totalorder %s50, %s51
      %p62 = scmp.eq.s32.totalorder %s28, 0
      %p63 = por %p61, %p62
      %p64 = scmp.ne.s32.totalorder %s50, %s51
      %p65 = scmp.eq.s32.totalorder %s29, 7
      %p66 = por %p64, %p65
      %p68 = scmp.ne.s32.totalorder %s51, %s67
      %p69 = scmp.eq.s32.totalorder %s29, 0
      %p70 = por %p68, %p69
      %s72 = sadd.s32 %s71, 1
      %p75 = scmp.eq.s32.totalorder %s23, 7
      %p76 = scmp.ne.s32.totalorder %s71, %s73
      %p77 = scmp.eq.s32.totalorder %s23, 0
      %p78 = por %p76, %p77
      %p79 = scmp.ne.s32.totalorder %s71, %s73
      %p80 = scmp.eq.s32.totalorder %s28, 7
      %p81 = por %p79, %p80
      %p82 = scmp.ne.s32.totalorder %s73, %s74
      %p83 = scmp.eq.s32.totalorder %s28, 0
      %p84 = por %p82, %p83
      %p85 = scmp.ne.s32.totalorder %s73, %s74
      %p86 = scmp.eq.s32.totalorder %s29, 7
      %p87 = por %p85, %p86
      %p89 = scmp.ne.s32.totalorder %s74, %s88
      %p90 = scmp.eq.s32.totalorder %s29, 0
      %p91 = por %p89, %p90
      %s93 = sadd.s32 %s92, 1
      %p96 = scmp.eq.s32.totalorder %s23, 7
      %p97 = scmp.ne.s32.totalorder %s92, %s94
      %p98 = scmp.eq.s32.totalorder %s23, 0
      %p99 = por %p97, %p98
      %p100 = scmp.ne.s32.totalorder %s92, %s94
      %p101 = scmp.eq.s32.totalorder %s28, 7
      %p102 = por %p100, %p101
      %p103 = scmp.ne.s32.totalorder %s94, %s95
      %p104 = scmp.eq.s32.totalorder %s28, 0
      %p105 = por %p103, %p104
      %p106 = scmp.ne.s32.totalorder %s94, %s95
      %p107 = scmp.eq.s32.totalorder %s29, 7
      %p108 = por %p106, %p107
      %p110 = scmp.ne.s32.totalorder %s95, %s109
      %p111 = scmp.eq.s32.totalorder %s29, 0
      %p112 = por %p110, %p111
      %s114 = sadd.s32 %s113, 1
      %p117 = scmp.eq.s32.totalorder %s23, 7
      %p118 = scmp.ne.s32.totalorder %s113, %s115
      %p119 = scmp.eq.s32.totalorder %s23, 0
      %p120 = por %p118, %p119
      %p121 = scmp.ne.s32.totalorder %s113, %s115
      %p122 = scmp.eq.s32.totalorder %s28, 7
      %p123 = por %p121, %p122
      %p124 = scmp.ne.s32.totalorder %s115, %s116
      %p125 = scmp.eq.s32.totalorder %s28, 0
      %p126 = por %p124, %p125
      %p127 = scmp.ne.s32.totalorder %s115, %s116
      %p128 = scmp.eq.s32.totalorder %s29, 7
      %p129 = por %p127, %p128
      %p131 = scmp.ne.s32.totalorder %s116, %s130
      %p132 = scmp.eq.s32.totalorder %s29, 0
      %p133 = por %p131, %p132
      %s134 = ssub.s32 %s30, %s42
      %s135 = ssub.s32 %s31, %s38
      %s136 = sor.u32 %s134, %s135
      %p137 = scmp.eq.s32.totalorder %s136, 0
      %s139 = sadd.s32 %s138, 1
      %s140 = scalar_select %p137, %s138, %s139
      %p143 = pneg %p137
      %p144 = scmp.eq.s32.totalorder %s23, 7
      %p145 = por %p143, %p144
      %p146 = scmp.ne.s32.totalorder %s138, %s141
      %p147 = scmp.eq.s32.totalorder %s23, 0
      %p148 = por %p146, %p147
      %p149 = scmp.ne.s32.totalorder %s138, %s141
      %p150 = scmp.eq.s32.totalorder %s28, 7
      %p151 = por %p149, %p150
      %p152 = scmp.ne.s32.totalorder %s141, %s142
      %p153 = scmp.eq.s32.totalorder %s28, 0
      %p154 = por %p152, %p153
      %p155 = scmp.ne.s32.totalorder %s141, %s142
      %p156 = scmp.eq.s32.totalorder %s29, 7
      %p157 = por %p155, %p156
      %p159 = scmp.ne.s32.totalorder %s142, %s158
      %p160 = scmp.eq.s32.totalorder %s29, 0
      %p161 = por %p159, %p160
      %s162 = ssub.s32 %s30, %s42
      %s163 = ssub.s32 %s31, %s38
      %s164 = sor.u32 %s162, %s163
      %p165 = scmp.eq.s32.totalorder %s164, 0
      %s167 = sadd.s32 %s166, 1
      %s168 = scalar_select %p165, %s166, %s167
      %p171 = pneg %p165
      %p172 = scmp.eq.s32.totalorder %s23, 7
      %p173 = por %p171, %p172
      %p174 = scmp.ne.s32.totalorder %s166, %s169
      %p175 = scmp.eq.s32.totalorder %s23, 0
      %p176 = por %p174, %p175
      %p177 = scmp.ne.s32.totalorder %s166, %s169
      %p178 = scmp.eq.s32.totalorder %s28, 7
      %p179 = por %p177, %p178
      %p180 = scmp.ne.s32.totalorder %s169, %s170
      %p181 = scmp.eq.s32.totalorder %s28, 0
      %p182 = por %p180, %p181
      %p183 = scmp.ne.s32.totalorder %s169, %s170
      %p184 = scmp.eq.s32.totalorder %s29, 7
      %p185 = por %p183, %p184
      %p187 = scmp.ne.s32.totalorder %s170, %s186
      %p188 = scmp.eq.s32.totalorder %s29, 0
      %p189 = por %p187, %p188
      %s190 = ssub.s32 %s30, %s42
      %s191 = ssub.s32 %s31, %s38
      %s192 = sor.u32 %s190, %s191
      %p193 = scmp.eq.s32.totalorder %s192, 0
      %s195 = sadd.s32 %s194, 1
      %s196 = scalar_select %p193, %s194, %s195
      %p199 = pneg %p193
      %p200 = scmp.eq.s32.totalorder %s23, 7
      %p201 = por %p199, %p200
      %p202 = scmp.ne.s32.totalorder %s194, %s197
      %p203 = scmp.eq.s32.totalorder %s23, 0
      %p204 = por %p202, %p203
      %p205 = scmp.ne.s32.totalorder %s194, %s197
      %p206 = scmp.eq.s32.totalorder %s28, 7
      %p207 = por %p205, %p206
      %p208 = scmp.ne.s32.totalorder %s197, %s198
      %p209 = scmp.eq.s32.totalorder %s28, 0
      %p210 = por %p208, %p209
      %p211 = scmp.ne.s32.totalorder %s197, %s198
      %p212 = scmp.eq.s32.totalorder %s29, 7
      %p213 = por %p211, %p212
      %p215 = scmp.ne.s32.totalorder %s198, %s214
      %p216 = scmp.eq.s32.totalorder %s29, 0
      %p217 = por %p215, %p216
      %s218 = ssub.s32 %s30, %s42
      %s219 = ssub.s32 %s31, %s38
      %s220 = sor.u32 %s218, %s219
      %p221 = scmp.eq.s32.totalorder %s220, 0
      %s223 = sadd.s32 %s222, 1
      %s224 = scalar_select %p221, %s222, %s223
      %p227 = pneg %p221
      %p228 = scmp.eq.s32.totalorder %s23, 7
      %p229 = por %p227, %p228
      %p230 = scmp.ne.s32.totalorder %s222, %s225
      %p231 = scmp.eq.s32.totalorder %s23, 0
      %p232 = por %p230, %p231
      %p233 = scmp.ne.s32.totalorder %s222, %s225
      %p234 = scmp.eq.s32.totalorder %s28, 7
      %p235 = por %p233, %p234
      %p236 = scmp.ne.s32.totalorder %s225, %s226
      %p237 = scmp.eq.s32.totalorder %s28, 0
      %p238 = por %p236, %p237
      %p239 = scmp.ne.s32.totalorder %s225, %s226
      %p240 = scmp.eq.s32.totalorder %s29, 7
      %p241 = por %p239, %p240
      %p243 = scmp.ne.s32.totalorder %s226, %s242
      %p244 = scmp.eq.s32.totalorder %s29, 0
      %p245 = por %p243, %p244
      %p246 = scmp.le.s32.totalorder 1, %s23
      %p247 = scmp.lt.s32.totalorder %s23, 9
      %p248 = pnand %p246, %p247
      %p249 = pneg %p248
      // Predicated region
      $region9: #{tpu_custom_call.1} parent=5 // pred_check
        _
      $region10: #{tpu_custom_call.1} parent=5 // pred_check_branch
        %251 = sbr.rel (%p248) target = $region12
      $region11: #{tpu_custom_call.1} parent=5 // pred_region
        %s252 = ssub.s32 %s23, 1
        // Predicated region
        $region13: #{tpu_custom_call.1} parent=11 // pred_check
          %p253 = pneg %p84
        $region14: #{tpu_custom_call.1} parent=11 // pred_check_branch
          %255 = sbr.rel (%p253) target = $region16
        $region15: #{tpu_custom_call.1} parent=11 // pred_region
          _
        $region16: #{tpu_custom_call.1} parent=11 // pred_fallthru
          _
        // Predicated region
        $region17: #{tpu_custom_call.1} parent=11 // pred_check
          %p256 = pneg %p105
        $region18: #{tpu_custom_call.1} parent=11 // pred_check_branch
          %258 = sbr.rel (%p256) target = $region20
        $region19: #{tpu_custom_call.1} parent=11 // pred_region
          _
        $region20: #{tpu_custom_call.1} parent=11 // pred_fallthru
          _
        // Predicated region
        $region21: #{tpu_custom_call.1} parent=11 // pred_check
          %p259 = pneg %p126
        $region22: #{tpu_custom_call.1} parent=11 // pred_check_branch
          %261 = sbr.rel (%p259) target = $region24
        $region23: #{tpu_custom_call.1} parent=11 // pred_region
          _
        $region24: #{tpu_custom_call.1} parent=11 // pred_fallthru
          _
      $region12: #{tpu_custom_call.1} parent=5 // pred_fallthru
        _
      %p262 = scmp.lt.s32.totalorder %s23, 8
      // Predicated region
      $region25: #{tpu_custom_call.1} parent=5 // pred_check
        %p263 = pneg %p262
      $region26: #{tpu_custom_call.1} parent=5 // pred_check_branch
        %265 = sbr.rel (%p263) target = $region28
      $region27: #{tpu_custom_call.1} parent=5 // pred_region
        // Predicated region
        $region29: #{tpu_custom_call.1} parent=27 // pred_check
          %p266 = pneg %p57
        $region30: #{tpu_custom_call.1} parent=27 // pred_check_branch
          %268 = sbr.rel (%p266) target = $region32
        $region31: #{tpu_custom_call.1} parent=27 // pred_region
          %s269 = sand.u32 %s47, 1
          %s270 = scalar_lea.sflag [#allocation3], %s269
          %s271 = sand.u32 %s47, 1
          %s272 = smul.addr %s271, 128
          %s273 = scalar_lea.vmem [#allocation2], %s272
          %s274 = smul.u32 8, %s31
          %s276 = ssub.s32 2048, 2048
          %277 = vsyncadd %s270, %s276
          %s278 = smul.addr %s30, 64
          %s279 = sadd.s32 %s274, %s278
          %s280 = smul.addr %s279, 128
          %s281 = scalar_lea.hbm %s0, %s280
          %s282 = sshll.u32 %s273, 4
          %s283 = int_to_ptr.vmem [resolvable:$true] %s282
          %288 = dma.hbm_to_vmem [thread:$0]  %s281, 2048, %s283, %s270, 4096, 1024, 64
        $region32: #{tpu_custom_call.1} parent=27 // pred_fallthru
          _
      $region28: #{tpu_custom_call.1} parent=5 // pred_fallthru
        _
      %p289 = scmp.le.s32.totalorder 1, %s23
      %p290 = scmp.lt.s32.totalorder %s23, 9
      %p291 = pnand %p289, %p290
      %p292 = pneg %p291
      // Predicated region
      $region33: #{tpu_custom_call.1} parent=5 // pred_check
        _
      $region34: #{tpu_custom_call.1} parent=5 // pred_check_branch
        %294 = sbr.rel (%p291) target = $region36
      $region35: #{tpu_custom_call.1} parent=5 // pred_region
        %s295 = ssub.s32 %s23, 1
        %s296 = sand.u32 %s50, 1
        %s297 = scalar_lea.sflag [#allocation3], %s296
        %s298 = sand.u32 %s50, 1
        %s299 = smul.addr %s298, 128
        %s300 = scalar_lea.vmem [#allocation2], %s299
        // Predicated region
        $region37: #{tpu_custom_call.1} parent=35 // pred_check
          %p301 = pneg %p63
        $region38: #{tpu_custom_call.1} parent=35 // pred_check_branch
          %303 = sbr.rel (%p301) target = $region40
        $region39: #{tpu_custom_call.1} parent=35 // pred_region
          %304 = dma.done %s297, 2048
        $region40: #{tpu_custom_call.1} parent=35 // pred_fallthru
          _
        %s305 = sand.u32 %s50, 1
        %s306 = scalar_lea.sflag [#allocation3], %s305
        %s307 = sand.u32 %s50, 1
        %s308 = smul.addr %s307, 128
        %s309 = scalar_lea.vmem [#allocation2], %s308
        %p310 = pneg %p63
        %p311 = pneg %p60
        %p312 = pneg %p84
        %p313 = pneg %p81
        %p314 = pneg %p105
        %p315 = pneg %p102
        %p316 = pneg %p126
        %p317 = pneg %p123
        %p318 = pneg %p154
        %p319 = pneg %p151
        %s320 = sand.u32 %s141, 1
        %s321 = scalar_lea.sflag [#allocation4], %s320
        %s322 = sand.u32 %s141, 1
        %s323 = smul.addr %s322, 128
        %s324 = scalar_lea.vmem [#allocation5], %s323
        %p325 = pneg %p182
        %p326 = pneg %p179
        %s327 = sand.u32 %s169, 1
        %s328 = scalar_lea.sflag [#allocation7], %s327
        %s329 = sand.u32 %s169, 1
        %s330 = smul.addr %s329, 8
        %s331 = scalar_lea.vmem [#allocation6], %s330
        %p332 = pneg %p210
        %p333 = pneg %p207
        %p334 = scmp.lt.s32.totalorder %s32, 1
        %s335 = scalar_select %p334, %s32, 1
        %p336 = scmp.lt.s32.totalorder %s33, 3
        %s337 = scalar_select %p336, %s33, 3
        %s338 = smul.addr %s337, 4
        %s339 = smul.addr %s335, 16
        %s340 = sadd.s32 %s338, %s339
        %s341 = smul.addr %s340, 8
        %s342 = scalar_lea.vmem %s6, %s341
        %p343 = pneg %p238
        %p344 = pneg %p235
        %p345 = scmp.lt.s32.totalorder %s32, 1
        %s346 = scalar_select %p345, %s32, 1
        %p347 = scmp.lt.s32.totalorder %s33, 3
        %s348 = scalar_select %p347, %s33, 3
        %s349 = smul.addr %s346, 4
        %s350 = sadd.s32 %s348, %s349
        %s351 = scalar_lea.vmem %s7, %s350
        %s352 = smul.u32 8, %s33
        %s353 = smul.u32 8, %s33
        %s354 = smul.u32 8, %s33
        %p355 = scmp.lt.s32.totalorder %s32, 1
        %s356 = scalar_select %p355, %s32, 1
        %p357 = scmp.lt.s32.totalorder %s33, 3
        %s358 = scalar_select %p357, %s33, 3
        %s359 = smul.addr %s358, 4
        %s360 = smul.addr %s356, 16
        %s361 = sadd.s32 %s359, %s360
        %s362 = smul.addr %s361, 8
        %s363 = scalar_lea.vmem %s6, %s362
        %p364 = scmp.lt.s32.totalorder %s32, 1
        %s365 = scalar_select %p364, %s32, 1
        %p366 = scmp.lt.s32.totalorder %s33, 3
        %s367 = scalar_select %p366, %s33, 3
        %s368 = smul.addr %s365, 4
        %s369 = sadd.s32 %s367, %s368
        %s370 = scalar_lea.vmem %s7, %s369
        %v371 = vld [vmem:[%s1] sm:$0xff]
        %v372 = vld [vmem:[%s1 + $0x8] sm:$0xff]
        %v373 = vld [vmem:[%s1 + $0x10] sm:$0xff]
        %v374 = vld [vmem:[%s1 + $0x18] sm:$0xff]
        %v375 = vld [vmem:[%s2] sm:$0xff]
        %v376 = vld [vmem:[%s2 + $0x8] sm:$0xff]
        %v377 = vld [vmem:[%s3] sm:$0xff]
        %v378 = vld [vmem:[%s3 + $0x8] sm:$0xff]
        %v379 = vld [vmem:[%s3 + $0x10] sm:$0xff]
        %v380 = vld [vmem:[%s3 + $0x18] sm:$0xff]
        %v381 = vlaneseq
        %v382 = vshrl.u32 %v381, 7
        %v383 = vadd.s32 %v382, 8
        %v384 = vadd.s32 %v382, 16
        %v385 = vadd.s32 %v382, 24
        %v386 = vld [vmem:[%s300] sm:$0xff]
        %v387 = vld [vmem:[%s300 + $0x8] sm:$0xff]
        %v388 = vld [vmem:[%s300 + $0x10] sm:$0xff]
        %v389 = vld [vmem:[%s300 + $0x18] sm:$0xff]
        %v390 = vld [vmem:[%s300 + $0x40] sm:$0xff]
        %v391 = vld [vmem:[%s300 + $0x48] sm:$0xff]
        %v392 = vld [vmem:[%s300 + $0x50] sm:$0xff]
        %v393 = vld [vmem:[%s300 + $0x58] sm:$0xff]
        %vm394 = vcmask 130048
        %v396 = vsel %vm394, %v371, 0
        %v399 = vsel %vm394, %v372, 0
        %v402 = vsel %vm394, %v373, 0
        %v405 = vsel %vm394, %v374, 0
        %407 = vmatprep.subr.mxu0 %v387
        %408 = vmatpush1.msra.mxu0 %v386
        %409 = vmatprep.subr.mxu0 %v391
        %410 = vmatpush1.msra.mxu0 %v390
        %411 = vmatprep.subr.mxu0 0.0
        %412 = vmatpush1.msra.mxu0 0.0
        %413 = vmatprep.subr.mxu0 0.0
        %414 = vmatpush1.msra.mxu0 0.0
        %415 = vmatprep.subr.mxu0 0.0
        %416 = vmatpush1.msra.mxu0 0.0
        %417 = vmatprep.subr.mxu0 0.0
        %418 = vmatpush1.msra.mxu0 0.0
        %419 = vmatprep.subr.mxu0 0.0
        %420 = vmatpush1.msra.mxu0 0.0
        %421 = vmatprep.subr.mxu0 0.0
        %422 = vmatpush1.msra.mxu0 0.0
        %423 = vmatprep.subr.mxu0 0.0
        %424 = vmatpush1.msra.mxu0 0.0
        %425 = vmatprep.subr.mxu0 0.0
        %426 = vmatpush1.msra.mxu0 0.0
        %427 = vmatprep.subr.mxu0 0.0
        %428 = vmatpush1.msra.mxu0 0.0
        %429 = vmatprep.subr.mxu0 0.0
        %430 = vmatpush1.msra.mxu0 0.0
        %431 = vmatprep.subr.mxu0 0.0
        %432 = vmatpush1.msra.mxu0 0.0
        %433 = vmatprep.subr.mxu0 0.0
        %434 = vmatpush1.msra.mxu0 0.0
        %435 = vmatprep.subr.mxu0 0.0
        %436 = vmatpush1.msra.mxu0 0.0
        %437 = vmatprep.subr.mxu0 0.0
        %438 = vmatpush1.msra.mxu0 0.0
        %439 = vmatprep.subr.mxu0 0.0
        %440 = vmatpush1.msra.mxu0 0.0
        %441 = vmatprep.subr.mxu0 0.0
        %442 = vmatpush1.msra.mxu0 0.0
        %443 = vmatprep.subr.mxu0 0.0
        %444 = vmatpush1.msra.mxu0 0.0
        %445 = vmatprep.subr.mxu0 0.0
        %446 = vmatpush1.msra.mxu0 0.0
        %447 = vmatprep.subr.mxu0 0.0
        %448 = vmatpush1.msra.mxu0 0.0
        %449 = vmatprep.subr.mxu0 0.0
        %450 = vmatpush1.msra.mxu0 0.0
        %451 = vmatprep.subr.mxu0 0.0
        %452 = vmatpush1.msra.mxu0 0.0
        %453 = vmatprep.subr.mxu0 0.0
        %454 = vmatpush1.msra.mxu0 0.0
        %455 = vmatprep.subr.mxu0 0.0
        %456 = vmatpush1.msra.mxu0 0.0
        %457 = vmatprep.subr.mxu0 0.0
        %458 = vmatpush1.msra.mxu0 0.0
        %459 = vmatprep.subr.mxu0 0.0
        %460 = vmatpush1.msra.mxu0 0.0
        %461 = vmatprep.subr.mxu0 0.0
        %462 = vmatpush1.msra.mxu0 0.0
        %463 = vmatprep.subr.mxu0 0.0
        %464 = vmatpush1.msra.mxu0 0.0
        %465 = vmatprep.subr.mxu0 0.0
        %466 = vmatpush1.msra.mxu0 0.0
        %467 = vmatprep.subr.mxu0 0.0
        %468 = vmatpush1.msra.mxu0 0.0
        %469 = vmatprep.subr.mxu0 0.0
        %470 = vmatpush1.msra.mxu0 0.0
        %471 = vmatprep.mubr.f32.mxu0 0.0
        %472 = vmatmul.mubr.f32.gmra.mrb[0].mxu0 %v396
        %v473 = vpop.f32.mrb[0].mxu0
        %v474 = vadd.f32 0.0, %v473
        %v475 = vpop.f32.mrb[0].mxu0
        %v476 = vadd.f32 0.0, %v475
        %477 = vmatprep.mubr.f32.mxu0 0.0
        %478 = vmatmul.mubr.f32.gmra.mrb[0].mxu0 %v399
        %v479 = vpop.f32.mrb[0].mxu0
        %v480 = vadd.f32 0.0, %v479
        %v481 = vpop.f32.mrb[0].mxu0
        %v482 = vadd.f32 0.0, %v481
        %483 = vmatprep.mubr.f32.mxu0 0.0
        %484 = vmatmul.mubr.f32.gmra.mrb[0].mxu0 %v402
        %v485 = vpop.f32.mrb[0].mxu0
        %v486 = vadd.f32 0.0, %v485
        %v487 = vpop.f32.mrb[0].mxu0
        %v488 = vadd.f32 0.0, %v487
        %489 = vmatprep.mubr.f32.mxu0 0.0
        %490 = vmatmul.mubr.f32.gmra.mrb[0].mxu0 %v405
        %v491 = vpop.f32.mrb[0].mxu0
        %v492 = vadd.f32 0.0, %v491
        %v493 = vpop.f32.mrb[0].mxu0
        %v494 = vadd.f32 0.0, %v493
        %495 = vdwg.mxu0
        %496 = vmatprep.subr.mxu0 %v389
        %497 = vmatpush1.msra.mxu0 %v388
        %498 = vmatprep.subr.mxu0 %v393
        %499 = vmatpush1.msra.mxu0 %v392
        %500 = vmatprep.subr.mxu0 0.0
        %501 = vmatpush1.msra.mxu0 0.0
        %502 = vmatprep.subr.mxu0 0.0
        %503 = vmatpush1.msra.mxu0 0.0
        %504 = vmatprep.subr.mxu0 0.0
        %505 = vmatpush1.msra.mxu0 0.0
        %506 = vmatprep.subr.mxu0 0.0
        %507 = vmatpush1.msra.mxu0 0.0
        %508 = vmatprep.subr.mxu0 0.0
        %509 = vmatpush1.msra.mxu0 0.0
        %510 = vmatprep.subr.mxu0 0.0
        %511 = vmatpush1.msra.mxu0 0.0
        %512 = vmatprep.subr.mxu0 0.0
        %513 = vmatpush1.msra.mxu0 0.0
        %514 = vmatprep.subr.mxu0 0.0
        %515 = vmatpush1.msra.mxu0 0.0
        %516 = vmatprep.subr.mxu0 0.0
        %517 = vmatpush1.msra.mxu0 0.0
        %518 = vmatprep.subr.mxu0 0.0
        %519 = vmatpush1.msra.mxu0 0.0
        %520 = vmatprep.subr.mxu0 0.0
        %521 = vmatpush1.msra.mxu0 0.0
        %522 = vmatprep.subr.mxu0 0.0
        %523 = vmatpush1.msra.mxu0 0.0
        %524 = vmatprep.subr.mxu0 0.0
        %525 = vmatpush1.msra.mxu0 0.0
        %526 = vmatprep.subr.mxu0 0.0
        %527 = vmatpush1.msra.mxu0 0.0
        %528 = vmatprep.subr.mxu0 0.0
        %529 = vmatpush1.msra.mxu0 0.0
        %530 = vmatprep.subr.mxu0 0.0
        %531 = vmatpush1.msra.mxu0 0.0
        %532 = vmatprep.subr.mxu0 0.0
        %533 = vmatpush1.msra.mxu0 0.0
        %534 = vmatprep.subr.mxu0 0.0
        %535 = vmatpush1.msra.mxu0 0.0
        %536 = vmatprep.subr.mxu0 0.0
        %537 = vmatpush1.msra.mxu0 0.0
        %538 = vmatprep.subr.mxu0 0.0
        %539 = vmatpush1.msra.mxu0 0.0
        %540 = vmatprep.subr.mxu0 0.0
        %541 = vmatpush1.msra.mxu0 0.0
        %542 = vmatprep.subr.mxu0 0.0
        %543 = vmatpush1.msra.mxu0 0.0
        %544 = vmatprep.subr.mxu0 0.0
        %545 = vmatpush1.msra.mxu0 0.0
        %546 = vmatprep.subr.mxu0 0.0
        %547 = vmatpush1.msra.mxu0 0.0
        %548 = vmatprep.subr.mxu0 0.0
        %549 = vmatpush1.msra.mxu0 0.0
        %550 = vmatprep.subr.mxu0 0.0
        %551 = vmatpush1.msra.mxu0 0.0
        %552 = vmatprep.subr.mxu0 0.0
        %553 = vmatpush1.msra.mxu0 0.0
        %554 = vmatprep.subr.mxu0 0.0
        %555 = vmatpush1.msra.mxu0 0.0
        %556 = vmatprep.subr.mxu0 0.0
        %557 = vmatpush1.msra.mxu0 0.0
        %558 = vmatprep.subr.mxu0 0.0
        %559 = vmatpush1.msra.mxu0 0.0
        %560 = vmatprep.mubr.f32.mxu0 0.0
        %561 = vmatmul.mubr.f32.gmra.mrb[0].mxu0 %v396
        %v562 = vpop.f32.mrb[0].mxu0
        %v563 = vadd.f32 0.0, %v562
        %v564 = vpop.f32.mrb[0].mxu0
        %v565 = vadd.f32 0.0, %v564
        %566 = vmatprep.mubr.f32.mxu0 0.0
        %567 = vmatmul.mubr.f32.gmra.mrb[0].mxu0 %v399
        %v568 = vpop.f32.mrb[0].mxu0
        %v569 = vadd.f32 0.0, %v568
        %v570 = vpop.f32.mrb[0].mxu0
        %v571 = vadd.f32 0.0, %v570
        %572 = vmatprep.mubr.f32.mxu0 0.0
        %573 = vmatmul.mubr.f32.gmra.mrb[0].mxu0 %v402
        %v574 = vpop.f32.mrb[0].mxu0
        %v575 = vadd.f32 0.0, %v574
        %v576 = vpop.f32.mrb[0].mxu0
        %v577 = vadd.f32 0.0, %v576
        %578 = vmatprep.mubr.f32.mxu0 0.0
        %579 = vmatmul.mubr.f32.gmra.mrb[0].mxu0 %v405
        %v580 = vpop.f32.mrb[0].mxu0
        %v581 = vadd.f32 0.0, %v580
        %v582 = vpop.f32.mrb[0].mxu0
        %v583 = vadd.f32 0.0, %v582
        %584 = vdwg.mxu0
        %586 = vset.pattern.permute.xlu0 0
        %587 = vperm.xlu0 %586, %v377
        %v588 = vpop.permute.xlu0 %587
        %591 = vset.pattern.permute.xlu0 0
        %592 = vperm.xlu0 %591, %v378
        %v593 = vpop.permute.xlu0 %592
        %596 = vset.pattern.permute.xlu0 0
        %597 = vperm.xlu0 %596, %v379
        %v598 = vpop.permute.xlu0 %597
        %601 = vset.pattern.permute.xlu0 0
        %602 = vperm.xlu0 %601, %v380
        %v603 = vpop.permute.xlu0 %602
        %v605 = vsub.f32 %v588, %v474
        %v606 = vsub.f32 %v588, %v476
        %v607 = vsub.f32 %v588, %v563
        %v608 = vsub.f32 %v588, %v565
        %v609 = vsub.f32 %v593, %v480
        %v610 = vsub.f32 %v593, %v482
        %v611 = vsub.f32 %v593, %v569
        %v612 = vsub.f32 %v593, %v571
        %v613 = vsub.f32 %v598, %v486
        %v614 = vsub.f32 %v598, %v488
        %v615 = vsub.f32 %v598, %v575
        %v616 = vsub.f32 %v598, %v577
        %v617 = vsub.f32 %v603, %v492
        %v618 = vsub.f32 %v603, %v494
        %v619 = vsub.f32 %v603, %v581
        %v620 = vsub.f32 %v603, %v583
        %v621 = vmin.f32 %v605, %v609
        %v622 = vmin.f32 %v621, %v613
        %v623 = vmin.f32 %v622, %v617
        %v624 = vrot.slane %v623, 4
        %v625 = vmin.f32 %v623, %v624
        %v626 = vrot.slane %v625, 2
        %v627 = vmin.f32 %v625, %v626
        %v628 = vrot.slane %v627, 1
        %v629 = vmin.f32 %v627, %v628
        %v630 = vmin.f32 %v606, %v610
        %v631 = vmin.f32 %v630, %v614
        %v632 = vmin.f32 %v631, %v618
        %v633 = vrot.slane %v632, 4
        %v634 = vmin.f32 %v632, %v633
        %v635 = vrot.slane %v634, 2
        %v636 = vmin.f32 %v634, %v635
        %v637 = vrot.slane %v636, 1
        %v638 = vmin.f32 %v636, %v637
        %v639 = vmin.f32 %v607, %v611
        %v640 = vmin.f32 %v639, %v615
        %v641 = vmin.f32 %v640, %v619
        %v642 = vrot.slane %v641, 4
        %v643 = vmin.f32 %v641, %v642
        %v644 = vrot.slane %v643, 2
        %v645 = vmin.f32 %v643, %v644
        %v646 = vrot.slane %v645, 1
        %v647 = vmin.f32 %v645, %v646
        %v648 = vmin.f32 %v608, %v612
        %v649 = vmin.f32 %v648, %v616
        %v650 = vmin.f32 %v649, %v620
        %v651 = vrot.slane %v650, 4
        %v652 = vmin.f32 %v650, %v651
        %v653 = vrot.slane %v652, 2
        %v654 = vmin.f32 %v652, %v653
        %v655 = vrot.slane %v654, 1
        %v656 = vmin.f32 %v654, %v655
        %vm657 = vcmp.eq.f32.partialorder %v605, %v629
        %vm658 = vcmp.eq.f32.partialorder %v606, %v638
        %vm659 = vcmp.eq.f32.partialorder %v607, %v647
        %vm660 = vcmp.eq.f32.partialorder %v608, %v656
        %vm661 = vcmp.eq.f32.partialorder %v609, %v629
        %vm662 = vcmp.eq.f32.partialorder %v610, %v638
        %vm663 = vcmp.eq.f32.partialorder %v611, %v647
        %vm664 = vcmp.eq.f32.partialorder %v612, %v656
        %vm665 = vcmp.eq.f32.partialorder %v613, %v629
        %vm666 = vcmp.eq.f32.partialorder %v614, %v638
        %vm667 = vcmp.eq.f32.partialorder %v615, %v647
        %vm668 = vcmp.eq.f32.partialorder %v616, %v656
        %vm669 = vcmp.eq.f32.partialorder %v617, %v629
        %vm670 = vcmp.eq.f32.partialorder %v618, %v638
        %vm671 = vcmp.eq.f32.partialorder %v619, %v647
        %vm672 = vcmp.eq.f32.partialorder %v620, %v656
        %v673 = vsel %vm657, %v382, 32
        %v674 = vsel %vm658, %v382, 32
        %v675 = vsel %vm659, %v382, 32
        %v676 = vsel %vm660, %v382, 32
        %v677 = vsel %vm661, %v383, 32
        %v678 = vsel %vm662, %v383, 32
        %v679 = vsel %vm663, %v383, 32
        %v680 = vsel %vm664, %v383, 32
        %v681 = vsel %vm665, %v384, 32
        %v682 = vsel %vm666, %v384, 32
        %v683 = vsel %vm667, %v384, 32
        %v684 = vsel %vm668, %v384, 32
        %v685 = vsel %vm669, %v385, 32
        %v686 = vsel %vm670, %v385, 32
        %v687 = vsel %vm671, %v385, 32
        %v688 = vsel %vm672, %v385, 32
        %vm689 = vcmp.lt.s32.totalorder %v673, %v677
        %v690 = vsel %vm689, %v673, %v677
        %vm691 = vcmp.lt.s32.totalorder %v690, %v681
        %v692 = vsel %vm691, %v690, %v681
        %vm693 = vcmp.lt.s32.totalorder %v692, %v685
        %v694 = vsel %vm693, %v692, %v685
        %v695 = vrot.slane %v694, 4
        %vm696 = vcmp.lt.s32.totalorder %v694, %v695
        %v697 = vsel %vm696, %v694, %v695
        %v698 = vrot.slane %v697, 2
        %vm699 = vcmp.lt.s32.totalorder %v697, %v698
        %v700 = vsel %vm699, %v697, %v698
        %v701 = vrot.slane %v700, 1
        %vm702 = vcmp.lt.s32.totalorder %v700, %v701
        %v703 = vsel %vm702, %v700, %v701
        %vm704 = vcmp.lt.s32.totalorder %v674, %v678
        %v705 = vsel %vm704, %v674, %v678
        %vm706 = vcmp.lt.s32.totalorder %v705, %v682
        %v707 = vsel %vm706, %v705, %v682
        %vm708 = vcmp.lt.s32.totalorder %v707, %v686
        %v709 = vsel %vm708, %v707, %v686
        %v710 = vrot.slane %v709, 4
        %vm711 = vcmp.lt.s32.totalorder %v709, %v710
        %v712 = vsel %vm711, %v709, %v710
        %v713 = vrot.slane %v712, 2
        %vm714 = vcmp.lt.s32.totalorder %v712, %v713
        %v715 = vsel %vm714, %v712, %v713
        %v716 = vrot.slane %v715, 1
        %vm717 = vcmp.lt.s32.totalorder %v715, %v716
        %v718 = vsel %vm717, %v715, %v716
        %vm719 = vcmp.lt.s32.totalorder %v675, %v679
        %v720 = vsel %vm719, %v675, %v679
        %vm721 = vcmp.lt.s32.totalorder %v720, %v683
        %v722 = vsel %vm721, %v720, %v683
        %vm723 = vcmp.lt.s32.totalorder %v722, %v687
        %v724 = vsel %vm723, %v722, %v687
        %v725 = vrot.slane %v724, 4
        %vm726 = vcmp.lt.s32.totalorder %v724, %v725
        %v727 = vsel %vm726, %v724, %v725
        %v728 = vrot.slane %v727, 2
        %vm729 = vcmp.lt.s32.totalorder %v727, %v728
        %v730 = vsel %vm729, %v727, %v728
        %v731 = vrot.slane %v730, 1
        %vm732 = vcmp.lt.s32.totalorder %v730, %v731
        %v733 = vsel %vm732, %v730, %v731
        %vm734 = vcmp.lt.s32.totalorder %v676, %v680
        %v735 = vsel %vm734, %v676, %v680
        %vm736 = vcmp.lt.s32.totalorder %v735, %v684
        %v737 = vsel %vm736, %v735, %v684
        %vm738 = vcmp.lt.s32.totalorder %v737, %v688
        %v739 = vsel %vm738, %v737, %v688
        %v740 = vrot.slane %v739, 4
        %vm741 = vcmp.lt.s32.totalorder %v739, %v740
        %v742 = vsel %vm741, %v739, %v740
        %v743 = vrot.slane %v742, 2
        %vm744 = vcmp.lt.s32.totalorder %v742, %v743
        %v745 = vsel %vm744, %v742, %v743
        %v746 = vrot.slane %v745, 1
        %vm747 = vcmp.lt.s32.totalorder %v745, %v746
        %v748 = vsel %vm747, %v745, %v746
        %vm749 = vcmp.eq.s32.totalorder %v382, %v703
        %vm750 = vcmp.eq.s32.totalorder %v382, %v718
        %vm751 = vcmp.eq.s32.totalorder %v382, %v733
        %vm752 = vcmp.eq.s32.totalorder %v382, %v748
        %vm753 = vcmp.eq.s32.totalorder %v383, %v703
        %vm754 = vcmp.eq.s32.totalorder %v383, %v718
        %vm755 = vcmp.eq.s32.totalorder %v383, %v733
        %vm756 = vcmp.eq.s32.totalorder %v383, %v748
        %vm757 = vcmp.eq.s32.totalorder %v384, %v703
        %vm758 = vcmp.eq.s32.totalorder %v384, %v718
        %vm759 = vcmp.eq.s32.totalorder %v384, %v733
        %vm760 = vcmp.eq.s32.totalorder %v384, %v748
        %vm761 = vcmp.eq.s32.totalorder %v385, %v703
        %vm762 = vcmp.eq.s32.totalorder %v385, %v718
        %vm763 = vcmp.eq.s32.totalorder %v385, %v733
        %vm764 = vcmp.eq.s32.totalorder %v385, %v748
        %v765 = vsel %vm749, 1, 0
        %v766 = vsel %vm750, 1, 0
        %v767 = vsel %vm751, 1, 0
        %v768 = vsel %vm752, 1, 0
        %v769 = vsel %vm753, 1, 0
        %v770 = vsel %vm754, 1, 0
        %v771 = vsel %vm755, 1, 0
        %v772 = vsel %vm756, 1, 0
        %v773 = vsel %vm757, 1, 0
        %v774 = vsel %vm758, 1, 0
        %v775 = vsel %vm759, 1, 0
        %v776 = vsel %vm760, 1, 0
        %v777 = vsel %vm761, 1, 0
        %v778 = vsel %vm762, 1, 0
        %v779 = vsel %vm763, 1, 0
        %v780 = vsel %vm764, 1, 0
        %v781 = vcvt.s32.f32 %v765
        %v782 = vcvt.s32.f32 %v766
        %v783 = vcvt.s32.f32 %v767
        %v784 = vcvt.s32.f32 %v768
        %v785 = vcvt.s32.f32 %v769
        %v786 = vcvt.s32.f32 %v770
        %v787 = vcvt.s32.f32 %v771
        %v788 = vcvt.s32.f32 %v772
        %v789 = vcvt.s32.f32 %v773
        %v790 = vcvt.s32.f32 %v774
        %v791 = vcvt.s32.f32 %v775
        %v792 = vcvt.s32.f32 %v776
        %v793 = vcvt.s32.f32 %v777
        %v794 = vcvt.s32.f32 %v778
        %v795 = vcvt.s32.f32 %v779
        %v796 = vcvt.s32.f32 %v780
        %vm797 = vcmask 261120
        %v799 = vsel %vm797, %v375, 0
        %v802 = vsel %vm797, %v376, 0
        %804 = vmatprep.subr.mxu0 %v782
        %805 = vmatpush1.msra.mxu0 %v781
        %806 = vmatprep.subr.mxu0 %v786
        %807 = vmatpush1.msra.mxu0 %v785
        %808 = vmatprep.subr.mxu0 %v790
        %809 = vmatpush1.msra.mxu0 %v789
        %810 = vmatprep.subr.mxu0 %v794
        %811 = vmatpush1.msra.mxu0 %v793
        %812 = vmatprep.subr.mxu0 0.0
        %813 = vmatpush1.msra.mxu0 0.0
        %814 = vmatprep.subr.mxu0 0.0
        %815 = vmatpush1.msra.mxu0 0.0
        %816 = vmatprep.subr.mxu0 0.0
        %817 = vmatpush1.msra.mxu0 0.0
        %818 = vmatprep.subr.mxu0 0.0
        %819 = vmatpush1.msra.mxu0 0.0
        %820 = vmatprep.subr.mxu0 0.0
        %821 = vmatpush1.msra.mxu0 0.0
        %822 = vmatprep.subr.mxu0 0.0
        %823 = vmatpush1.msra.mxu0 0.0
        %824 = vmatprep.subr.mxu0 0.0
        %825 = vmatpush1.msra.mxu0 0.0
        %826 = vmatprep.subr.mxu0 0.0
        %827 = vmatpush1.msra.mxu0 0.0
        %828 = vmatprep.subr.mxu0 0.0
        %829 = vmatpush1.msra.mxu0 0.0
        %830 = vmatprep.subr.mxu0 0.0
        %831 = vmatpush1.msra.mxu0 0.0
        %832 = vmatprep.subr.mxu0 0.0
        %833 = vmatpush1.msra.mxu0 0.0
        %834 = vmatprep.subr.mxu0 0.0
        %835 = vmatpush1.msra.mxu0 0.0
        %836 = vmatprep.subr.mxu0 0.0
        %837 = vmatpush1.msra.mxu0 0.0
        %838 = vmatprep.subr.mxu0 0.0
        %839 = vmatpush1.msra.mxu0 0.0
        %840 = vmatprep.subr.mxu0 0.0
        %841 = vmatpush1.msra.mxu0 0.0
        %842 = vmatprep.subr.mxu0 0.0
        %843 = vmatpush1.msra.mxu0 0.0
        %844 = vmatprep.subr.mxu0 0.0
        %845 = vmatpush1.msra.mxu0 0.0
        %846 = vmatprep.subr.mxu0 0.0
        %847 = vmatpush1.msra.mxu0 0.0
        %848 = vmatprep.subr.mxu0 0.0
        %849 = vmatpush1.msra.mxu0 0.0
        %850 = vmatprep.subr.mxu0 0.0
        %851 = vmatpush1.msra.mxu0 0.0
        %852 = vmatprep.subr.mxu0 0.0
        %853 = vmatpush1.msra.mxu0 0.0
        %854 = vmatprep.subr.mxu0 0.0
        %855 = vmatpush1.msra.mxu0 0.0
        %856 = vmatprep.subr.mxu0 0.0
        %857 = vmatpush1.msra.mxu0 0.0
        %858 = vmatprep.subr.mxu0 0.0
        %859 = vmatpush1.msra.mxu0 0.0
        %860 = vmatprep.subr.mxu0 0.0
        %861 = vmatpush1.msra.mxu0 0.0
        %862 = vmatprep.subr.mxu0 0.0
        %863 = vmatpush1.msra.mxu0 0.0
        %864 = vmatprep.subr.mxu0 0.0
        %865 = vmatpush1.msra.mxu0 0.0
        %866 = vmatprep.subr.mxu0 0.0
        %867 = vmatpush1.msra.mxu0 0.0
        %868 = vmatprep.mubr.f32.mxu0 0.0
        %869 = vmatmul.mubr.f32.gmra.mrb[0].mxu0 %v799
        %v870 = vpop.f32.mrb[0].mxu0
        %v871 = vadd.f32 0.0, %v870
        %v872 = vpop.f32.mrb[0].mxu0
        %v873 = vadd.f32 0.0, %v872
        %874 = vmatprep.mubr.f32.mxu0 0.0
        %875 = vmatmul.mubr.f32.gmra.mrb[0].mxu0 %v802
        %v876 = vpop.f32.mrb[0].mxu0
        %v877 = vadd.f32 0.0, %v876
        %v878 = vpop.f32.mrb[0].mxu0
        %v879 = vadd.f32 0.0, %v878
        %880 = vdwg.mxu0
        %881 = vmatprep.subr.mxu0 %v784
        %882 = vmatpush1.msra.mxu0 %v783
        %883 = vmatprep.subr.mxu0 %v788
        %884 = vmatpush1.msra.mxu0 %v787
        %885 = vmatprep.subr.mxu0 %v792
        %886 = vmatpush1.msra.mxu0 %v791
        %887 = vmatprep.subr.mxu0 %v796
        %888 = vmatpush1.msra.mxu0 %v795
        %889 = vmatprep.subr.mxu0 0.0
        %890 = vmatpush1.msra.mxu0 0.0
        %891 = vmatprep.subr.mxu0 0.0
        %892 = vmatpush1.msra.mxu0 0.0
        %893 = vmatprep.subr.mxu0 0.0
        %894 = vmatpush1.msra.mxu0 0.0
        %895 = vmatprep.subr.mxu0 0.0
        %896 = vmatpush1.msra.mxu0 0.0
        %897 = vmatprep.subr.mxu0 0.0
        %898 = vmatpush1.msra.mxu0 0.0
        %899 = vmatprep.subr.mxu0 0.0
        %900 = vmatpush1.msra.mxu0 0.0
        %901 = vmatprep.subr.mxu0 0.0
        %902 = vmatpush1.msra.mxu0 0.0
        %903 = vmatprep.subr.mxu0 0.0
        %904 = vmatpush1.msra.mxu0 0.0
        %905 = vmatprep.subr.mxu0 0.0
        %906 = vmatpush1.msra.mxu0 0.0
        %907 = vmatprep.subr.mxu0 0.0
        %908 = vmatpush1.msra.mxu0 0.0
        %909 = vmatprep.subr.mxu0 0.0
        %910 = vmatpush1.msra.mxu0 0.0
        %911 = vmatprep.subr.mxu0 0.0
        %912 = vmatpush1.msra.mxu0 0.0
        %913 = vmatprep.subr.mxu0 0.0
        %914 = vmatpush1.msra.mxu0 0.0
        %915 = vmatprep.subr.mxu0 0.0
        %916 = vmatpush1.msra.mxu0 0.0
        %917 = vmatprep.subr.mxu0 0.0
        %918 = vmatpush1.msra.mxu0 0.0
        %919 = vmatprep.subr.mxu0 0.0
        %920 = vmatpush1.msra.mxu0 0.0
        %921 = vmatprep.subr.mxu0 0.0
        %922 = vmatpush1.msra.mxu0 0.0
        %923 = vmatprep.subr.mxu0 0.0
        %924 = vmatpush1.msra.mxu0 0.0
        %925 = vmatprep.subr.mxu0 0.0
        %926 = vmatpush1.msra.mxu0 0.0
        %927 = vmatprep.subr.mxu0 0.0
        %928 = vmatpush1.msra.mxu0 0.0
        %929 = vmatprep.subr.mxu0 0.0
        %930 = vmatpush1.msra.mxu0 0.0
        %931 = vmatprep.subr.mxu0 0.0
        %932 = vmatpush1.msra.mxu0 0.0
        %933 = vmatprep.subr.mxu0 0.0
        %934 = vmatpush1.msra.mxu0 0.0
        %935 = vmatprep.subr.mxu0 0.0
        %936 = vmatpush1.msra.mxu0 0.0
        %937 = vmatprep.subr.mxu0 0.0
        %938 = vmatpush1.msra.mxu0 0.0
        %939 = vmatprep.subr.mxu0 0.0
        %940 = vmatpush1.msra.mxu0 0.0
        %941 = vmatprep.subr.mxu0 0.0
        %942 = vmatpush1.msra.mxu0 0.0
        %943 = vmatprep.subr.mxu0 0.0
        %944 = vmatpush1.msra.mxu0 0.0
        %945 = vmatprep.mubr.f32.mxu0 0.0
        %946 = vmatmul.mubr.f32.gmra.mrb[0].mxu0 %v799
        %v947 = vpop.f32.mrb[0].mxu0
        %v948 = vadd.f32 0.0, %v947
        %v949 = vpop.f32.mrb[0].mxu0
        %v950 = vadd.f32 0.0, %v949
        %951 = vmatprep.mubr.f32.mxu0 0.0
        %952 = vmatmul.mubr.f32.gmra.mrb[0].mxu0 %v802
        %v953 = vpop.f32.mrb[0].mxu0
        %v954 = vadd.f32 0.0, %v953
        %v955 = vpop.f32.mrb[0].mxu0
        %v956 = vadd.f32 0.0, %v955
        %957 = vdwg.mxu0
        %v958 = vsub.f32 %v871, %v386
        %v959 = vsub.f32 %v873, %v387
        %v960 = vsub.f32 %v948, %v388
        %v961 = vsub.f32 %v950, %v389
        %v962 = vsub.f32 %v877, %v390
        %v963 = vsub.f32 %v879, %v391
        %v964 = vsub.f32 %v954, %v392
        %v965 = vsub.f32 %v956, %v393
        %966 = vst [vmem:[%s324] sm:$0xff] %v871
        %967 = vst [vmem:[%s324 + $0x8] sm:$0xff] %v873
        %968 = vst [vmem:[%s324 + $0x10] sm:$0xff] %v948
        %969 = vst [vmem:[%s324 + $0x18] sm:$0xff] %v950
        %970 = vst [vmem:[%s324 + $0x40] sm:$0xff] %v877
        %971 = vst [vmem:[%s324 + $0x48] sm:$0xff] %v879
        %972 = vst [vmem:[%s324 + $0x50] sm:$0xff] %v954
        %973 = vst [vmem:[%s324 + $0x58] sm:$0xff] %v956
        %v974 = vcombine.low %v703, %v718
        %v975 = vcombine.low %v733, %v748
        %v977 = vunpack.c.l.s4 1966171168
        %v978 = vunpack.c.0.s8 %v977
        %v979 = vlaneseq
        %v980 = vshrl.u32 %v979, 7
        %v981 = vsub.s32 %v978, %v980
        %v982 = vrot.slane %v974, %v981
        %v984 = vunpack.c.l.s4 1966171168
        %v985 = vunpack.c.0.s8 %v984
        %v986 = vlaneseq
        %v987 = vshrl.u32 %v986, 7
        %v988 = vsub.s32 %v985, %v987
        %v989 = vrot.slane %v975, %v988
        %v990 = vcombine.low %v982, %v989
        %v992 = vunpack.c.l.s4 1966171168
        %v993 = vunpack.c.0.s8 %v992
        %v994 = vlaneseq
        %v995 = vshrl.u32 %v994, 7
        %v996 = vsub.s32 %v993, %v995
        %v997 = vrot.slane %v990, %v996
        %v998 = vlaneseq
        %vm999 = vcmp.ge.s32.totalorder %v998, 0
        %vm1000 = vcmp.lt.s32.totalorder %v998, 512
        %vm1001 = vmand %vm999, %vm1000
        %1002 = vst.msk [vmem:[%s331] sm:$0xf] %vm1001, %v997
        %v1003 = vadd.f32 %v781, %v782
        %v1004 = vadd.f32 %v1003, %v783
        %v1005 = vadd.f32 %v1004, %v784
        %1006 = vadd.xlane.f32.xlu0 %v1005
        %v1007 = vpop.xlane.xlu0 %1006
        %v1008 = vadd.f32 %v785, %v786
        %v1009 = vadd.f32 %v1008, %v787
        %v1010 = vadd.f32 %v1009, %v788
        %1011 = vadd.xlane.f32.xlu0 %v1010
        %v1012 = vpop.xlane.xlu0 %1011
        %v1013 = vadd.f32 %v789, %v790
        %v1014 = vadd.f32 %v1013, %v791
        %v1015 = vadd.f32 %v1014, %v792
        %1016 = vadd.xlane.f32.xlu0 %v1015
        %v1017 = vpop.xlane.xlu0 %1016
        %v1018 = vadd.f32 %v793, %v794
        %v1019 = vadd.f32 %v1018, %v795
        %v1020 = vadd.f32 %v1019, %v796
        %1021 = vadd.xlane.f32.xlu0 %v1020
        %v1022 = vpop.xlane.xlu0 %1021
        %v1023 = vadd.f32 %v1007, 0.0
        %v1024 = vadd.f32 %v1012, 0.0
        %v1025 = vadd.f32 %v1017, 0.0
        %v1026 = vadd.f32 %v1022, 0.0
        %v1027 = vmul.f32 %v958, %v958
        %v1028 = vmul.f32 %v959, %v959
        %v1029 = vmul.f32 %v960, %v960
        %v1030 = vmul.f32 %v961, %v961
        %v1031 = vmul.f32 %v962, %v962
        %v1032 = vmul.f32 %v963, %v963
        %v1033 = vmul.f32 %v964, %v964
        %v1034 = vmul.f32 %v965, %v965
        %v1035 = vadd.f32 %v1027, %v1028
        %v1036 = vadd.f32 %v1035, %v1029
        %v1037 = vadd.f32 %v1036, %v1030
        %v1038 = vadd.f32 %v1037, %v1031
        %v1039 = vadd.f32 %v1038, %v1032
        %v1040 = vadd.f32 %v1039, %v1033
        %v1041 = vadd.f32 %v1040, %v1034
        %1042 = vadd.xlane.f32.xlu0 %v1041
        %v1043 = vpop.xlane.xlu0 %1042
        %v1044 = vrot.slane %v1043, 4
        %v1045 = vadd.f32 %v1043, %v1044
        %v1046 = vrot.slane %v1045, 2
        %v1047 = vadd.f32 %v1045, %v1046
        %v1048 = vrot.slane %v1047, 1
        %v1049 = vadd.f32 %v1047, %v1048
        %s1050 = vtos %v1049
        %s1051 = sadd.f32 %s1050, 0.0
        %v1052 = vld [vmem:[%s300 + $0x20] sm:$0xff]
        %v1053 = vld [vmem:[%s300 + $0x28] sm:$0xff]
        %v1054 = vld [vmem:[%s300 + $0x30] sm:$0xff]
        %v1055 = vld [vmem:[%s300 + $0x38] sm:$0xff]
        %v1056 = vld [vmem:[%s300 + $0x60] sm:$0xff]
        %v1057 = vld [vmem:[%s300 + $0x68] sm:$0xff]
        %v1058 = vld [vmem:[%s300 + $0x70] sm:$0xff]
        %v1059 = vld [vmem:[%s300 + $0x78] sm:$0xff]
        %1060 = vmatprep.subr.mxu0 %v1053
        %1061 = vmatpush1.msra.mxu0 %v1052
        %1062 = vmatprep.subr.mxu0 %v1057
        %1063 = vmatpush1.msra.mxu0 %v1056
        %1064 = vmatprep.subr.mxu0 0.0
        %1065 = vmatpush1.msra.mxu0 0.0
        %1066 = vmatprep.subr.mxu0 0.0
        %1067 = vmatpush1.msra.mxu0 0.0
        %1068 = vmatprep.subr.mxu0 0.0
        %1069 = vmatpush1.msra.mxu0 0.0
        %1070 = vmatprep.subr.mxu0 0.0
        %1071 = vmatpush1.msra.mxu0 0.0
        %1072 = vmatprep.subr.mxu0 0.0
        %1073 = vmatpush1.msra.mxu0 0.0
        %1074 = vmatprep.subr.mxu0 0.0
        %1075 = vmatpush1.msra.mxu0 0.0
        %1076 = vmatprep.subr.mxu0 0.0
        %1077 = vmatpush1.msra.mxu0 0.0
        %1078 = vmatprep.subr.mxu0 0.0
        %1079 = vmatpush1.msra.mxu0 0.0
        %1080 = vmatprep.subr.mxu0 0.0
        %1081 = vmatpush1.msra.mxu0 0.0
        %1082 = vmatprep.subr.mxu0 0.0
        %1083 = vmatpush1.msra.mxu0 0.0
        %1084 = vmatprep.subr.mxu0 0.0
        %1085 = vmatpush1.msra.mxu0 0.0
        %1086 = vmatprep.subr.mxu0 0.0
        %1087 = vmatpush1.msra.mxu0 0.0
        %1088 = vmatprep.subr.mxu0 0.0
        %1089 = vmatpush1.msra.mxu0 0.0
        %1090 = vmatprep.subr.mxu0 0.0
        %1091 = vmatpush1.msra.mxu0 0.0
        %1092 = vmatprep.subr.mxu0 0.0
        %1093 = vmatpush1.msra.mxu0 0.0
        %1094 = vmatprep.subr.mxu0 0.0
        %1095 = vmatpush1.msra.mxu0 0.0
        %1096 = vmatprep.subr.mxu0 0.0
        %1097 = vmatpush1.msra.mxu0 0.0
        %1098 = vmatprep.subr.mxu0 0.0
        %1099 = vmatpush1.msra.mxu0 0.0
        %1100 = vmatprep.subr.mxu0 0.0
        %1101 = vmatpush1.msra.mxu0 0.0
        %1102 = vmatprep.subr.mxu0 0.0
        %1103 = vmatpush1.msra.mxu0 0.0
        %1104 = vmatprep.subr.mxu0 0.0
        %1105 = vmatpush1.msra.mxu0 0.0
        %1106 = vmatprep.subr.mxu0 0.0
        %1107 = vmatpush1.msra.mxu0 0.0
        %1108 = vmatprep.subr.mxu0 0.0
        %1109 = vmatpush1.msra.mxu0 0.0
        %1110 = vmatprep.subr.mxu0 0.0
        %1111 = vmatpush1.msra.mxu0 0.0
        %1112 = vmatprep.subr.mxu0 0.0
        %1113 = vmatpush1.msra.mxu0 0.0
        %1114 = vmatprep.subr.mxu0 0.0
        %1115 = vmatpush1.msra.mxu0 0.0
        %1116 = vmatprep.subr.mxu0 0.0
        %1117 = vmatpush1.msra.mxu0 0.0
        %1118 = vmatprep.subr.mxu0 0.0
        %1119 = vmatpush1.msra.mxu0 0.0
        %1120 = vmatprep.subr.mxu0 0.0
        %1121 = vmatpush1.msra.mxu0 0.0
        %1122 = vmatprep.subr.mxu0 0.0
        %1123 = vmatpush1.msra.mxu0 0.0
        %1124 = vmatprep.mubr.f32.mxu0 0.0
        %1125 = vmatmul.mubr.f32.gmra.mrb[0].mxu0 %v396
        %v1126 = vpop.f32.mrb[0].mxu0
        %v1127 = vadd.f32 0.0, %v1126
        %v1128 = vpop.f32.mrb[0].mxu0
        %v1129 = vadd.f32 0.0, %v1128
        %1130 = vmatprep.mubr.f32.mxu0 0.0
        %1131 = vmatmul.mubr.f32.gmra.mrb[0].mxu0 %v399
        %v1132 = vpop.f32.mrb[0].mxu0
        %v1133 = vadd.f32 0.0, %v1132
        %v1134 = vpop.f32.mrb[0].mxu0
        %v1135 = vadd.f32 0.0, %v1134
        %1136 = vmatprep.mubr.f32.mxu0 0.0
        %1137 = vmatmul.mubr.f32.gmra.mrb[0].mxu0 %v402
        %v1138 = vpop.f32.mrb[0].mxu0
        %v1139 = vadd.f32 0.0, %v1138
        %v1140 = vpop.f32.mrb[0].mxu0
        %v1141 = vadd.f32 0.0, %v1140
        %1142 = vmatprep.mubr.f32.mxu0 0.0
        %1143 = vmatmul.mubr.f32.gmra.mrb[0].mxu0 %v405
        %v1144 = vpop.f32.mrb[0].mxu0
        %v1145 = vadd.f32 0.0, %v1144
        %v1146 = vpop.f32.mrb[0].mxu0
        %v1147 = vadd.f32 0.0, %v1146
        %1148 = vdwg.mxu0
        %1149 = vmatprep.subr.mxu0 %v1055
        %1150 = vmatpush1.msra.mxu0 %v1054
        %1151 = vmatprep.subr.mxu0 %v1059
        %1152 = vmatpush1.msra.mxu0 %v1058
        %1153 = vmatprep.subr.mxu0 0.0
        %1154 = vmatpush1.msra.mxu0 0.0
        %1155 = vmatprep.subr.mxu0 0.0
        %1156 = vmatpush1.msra.mxu0 0.0
        %1157 = vmatprep.subr.mxu0 0.0
        %1158 = vmatpush1.msra.mxu0 0.0
        %1159 = vmatprep.subr.mxu0 0.0
        %1160 = vmatpush1.msra.mxu0 0.0
        %1161 = vmatprep.subr.mxu0 0.0
        %1162 = vmatpush1.msra.mxu0 0.0
        %1163 = vmatprep.subr.mxu0 0.0
        %1164 = vmatpush1.msra.mxu0 0.0
        %1165 = vmatprep.subr.mxu0 0.0
        %1166 = vmatpush1.msra.mxu0 0.0
        %1167 = vmatprep.subr.mxu0 0.0
        %1168 = vmatpush1.msra.mxu0 0.0
        %1169 = vmatprep.subr.mxu0 0.0
        %1170 = vmatpush1.msra.mxu0 0.0
        %1171 = vmatprep.subr.mxu0 0.0
        %1172 = vmatpush1.msra.mxu0 0.0
        %1173 = vmatprep.subr.mxu0 0.0
        %1174 = vmatpush1.msra.mxu0 0.0
        %1175 = vmatprep.subr.mxu0 0.0
        %1176 = vmatpush1.msra.mxu0 0.0
        %1177 = vmatprep.subr.mxu0 0.0
        %1178 = vmatpush1.msra.mxu0 0.0
        %1179 = vmatprep.subr.mxu0 0.0
        %1180 = vmatpush1.msra.mxu0 0.0
        %1181 = vmatprep.subr.mxu0 0.0
        %1182 = vmatpush1.msra.mxu0 0.0
        %1183 = vmatprep.subr.mxu0 0.0
        %1184 = vmatpush1.msra.mxu0 0.0
        %1185 = vmatprep.subr.mxu0 0.0
        %1186 = vmatpush1.msra.mxu0 0.0
        %1187 = vmatprep.subr.mxu0 0.0
        %1188 = vmatpush1.msra.mxu0 0.0
        %1189 = vmatprep.subr.mxu0 0.0
        %1190 = vmatpush1.msra.mxu0 0.0
        %1191 = vmatprep.subr.mxu0 0.0
        %1192 = vmatpush1.msra.mxu0 0.0
        %1193 = vmatprep.subr.mxu0 0.0
        %1194 = vmatpush1.msra.mxu0 0.0
        %1195 = vmatprep.subr.mxu0 0.0
        %1196 = vmatpush1.msra.mxu0 0.0
        %1197 = vmatprep.subr.mxu0 0.0
        %1198 = vmatpush1.msra.mxu0 0.0
        %1199 = vmatprep.subr.mxu0 0.0
        %1200 = vmatpush1.msra.mxu0 0.0
        %1201 = vmatprep.subr.mxu0 0.0
        %1202 = vmatpush1.msra.mxu0 0.0
        %1203 = vmatprep.subr.mxu0 0.0
        %1204 = vmatpush1.msra.mxu0 0.0
        %1205 = vmatprep.subr.mxu0 0.0
        %1206 = vmatpush1.msra.mxu0 0.0
        %1207 = vmatprep.subr.mxu0 0.0
        %1208 = vmatpush1.msra.mxu0 0.0
        %1209 = vmatprep.subr.mxu0 0.0
        %1210 = vmatpush1.msra.mxu0 0.0
        %1211 = vmatprep.subr.mxu0 0.0
        %1212 = vmatpush1.msra.mxu0 0.0
        %1213 = vmatprep.mubr.f32.mxu0 0.0
        %1214 = vmatmul.mubr.f32.gmra.mrb[0].mxu0 %v396
        %v1215 = vpop.f32.mrb[0].mxu0
        %v1216 = vadd.f32 0.0, %v1215
        %v1217 = vpop.f32.mrb[0].mxu0
        %v1218 = vadd.f32 0.0, %v1217
        %1219 = vmatprep.mubr.f32.mxu0 0.0
        %1220 = vmatmul.mubr.f32.gmra.mrb[0].mxu0 %v399
        %v1221 = vpop.f32.mrb[0].mxu0
        %v1222 = vadd.f32 0.0, %v1221
        %v1223 = vpop.f32.mrb[0].mxu0
        %v1224 = vadd.f32 0.0, %v1223
        %1225 = vmatprep.mubr.f32.mxu0 0.0
        %1226 = vmatmul.mubr.f32.gmra.mrb[0].mxu0 %v402
        %v1227 = vpop.f32.mrb[0].mxu0
        %v1228 = vadd.f32 0.0, %v1227
        %v1229 = vpop.f32.mrb[0].mxu0
        %v1230 = vadd.f32 0.0, %v1229
        %1231 = vmatprep.mubr.f32.mxu0 0.0
        %1232 = vmatmul.mubr.f32.gmra.mrb[0].mxu0 %v405
        %v1233 = vpop.f32.mrb[0].mxu0
        %v1234 = vadd.f32 0.0, %v1233
        %v1235 = vpop.f32.mrb[0].mxu0
        %v1236 = vadd.f32 0.0, %v1235
        %1237 = vdwg.mxu0
        %v1238 = vsub.f32 %v588, %v1127
        %v1239 = vsub.f32 %v588, %v1129
        %v1240 = vsub.f32 %v588, %v1216
        %v1241 = vsub.f32 %v588, %v1218
        %v1242 = vsub.f32 %v593, %v1133
        %v1243 = vsub.f32 %v593, %v1135
        %v1244 = vsub.f32 %v593, %v1222
        %v1245 = vsub.f32 %v593, %v1224
        %v1246 = vsub.f32 %v598, %v1139
        %v1247 = vsub.f32 %v598, %v1141
        %v1248 = vsub.f32 %v598, %v1228
        %v1249 = vsub.f32 %v598, %v1230
        %v1250 = vsub.f32 %v603, %v1145
        %v1251 = vsub.f32 %v603, %v1147
        %v1252 = vsub.f32 %v603, %v1234
        %v1253 = vsub.f32 %v603, %v1236
        %v1254 = vmin.f32 %v1238, %v1242
        %v1255 = vmin.f32 %v1254, %v1246
        %v1256 = vmin.f32 %v1255, %v1250
        %v1257 = vrot.slane %v1256, 4
        %v1258 = vmin.f32 %v1256, %v1257
        %v1259 = vrot.slane %v1258, 2
        %v1260 = vmin.f32 %v1258, %v1259
        %v1261 = vrot.slane %v1260, 1
        %v1262 = vmin.f32 %v1260, %v1261
        %v1263 = vmin.f32 %v1239, %v1243
        %v1264 = vmin.f32 %v1263, %v1247
        %v1265 = vmin.f32 %v1264, %v1251
        %v1266 = vrot.slane %v1265, 4
        %v1267 = vmin.f32 %v1265, %v1266
        %v1268 = vrot.slane %v1267, 2
        %v1269 = vmin.f32 %v1267, %v1268
        %v1270 = vrot.slane %v1269, 1
        %v1271 = vmin.f32 %v1269, %v1270
        %v1272 = vmin.f32 %v1240, %v1244
        %v1273 = vmin.f32 %v1272, %v1248
        %v1274 = vmin.f32 %v1273, %v1252
        %v1275 = vrot.slane %v1274, 4
        %v1276 = vmin.f32 %v1274, %v1275
        %v1277 = vrot.slane %v1276, 2
        %v1278 = vmin.f32 %v1276, %v1277
        %v1279 = vrot.slane %v1278, 1
        %v1280 = vmin.f32 %v1278, %v1279
        %v1281 = vmin.f32 %v1241, %v1245
        %v1282 = vmin.f32 %v1281, %v1249
        %v1283 = vmin.f32 %v1282, %v1253
        %v1284 = vrot.slane %v1283, 4
        %v1285 = vmin.f32 %v1283, %v1284
        %v1286 = vrot.slane %v1285, 2
        %v1287 = vmin.f32 %v1285, %v1286
        %v1288 = vrot.slane %v1287, 1
        %v1289 = vmin.f32 %v1287, %v1288
        %vm1290 = vcmp.eq.f32.partialorder %v1238, %v1262
        %vm1291 = vcmp.eq.f32.partialorder %v1239, %v1271
        %vm1292 = vcmp.eq.f32.partialorder %v1240, %v1280
        %vm1293 = vcmp.eq.f32.partialorder %v1241, %v1289
        %vm1294 = vcmp.eq.f32.partialorder %v1242, %v1262
        %vm1295 = vcmp.eq.f32.partialorder %v1243, %v1271
        %vm1296 = vcmp.eq.f32.partialorder %v1244, %v1280
        %vm1297 = vcmp.eq.f32.partialorder %v1245, %v1289
        %vm1298 = vcmp.eq.f32.partialorder %v1246, %v1262
        %vm1299 = vcmp.eq.f32.partialorder %v1247, %v1271
        %vm1300 = vcmp.eq.f32.partialorder %v1248, %v1280
        %vm1301 = vcmp.eq.f32.partialorder %v1249, %v1289
        %vm1302 = vcmp.eq.f32.partialorder %v1250, %v1262
        %vm1303 = vcmp.eq.f32.partialorder %v1251, %v1271
        %vm1304 = vcmp.eq.f32.partialorder %v1252, %v1280
        %vm1305 = vcmp.eq.f32.partialorder %v1253, %v1289
        %v1306 = vsel %vm1290, %v382, 32
        %v1307 = vsel %vm1291, %v382, 32
        %v1308 = vsel %vm1292, %v382, 32
        %v1309 = vsel %vm1293, %v382, 32
        %v1310 = vsel %vm1294, %v383, 32
        %v1311 = vsel %vm1295, %v383, 32
        %v1312 = vsel %vm1296, %v383, 32
        %v1313 = vsel %vm1297, %v383, 32
        %v1314 = vsel %vm1298, %v384, 32
        %v1315 = vsel %vm1299, %v384, 32
        %v1316 = vsel %vm1300, %v384, 32
        %v1317 = vsel %vm1301, %v384, 32
        %v1318 = vsel %vm1302, %v385, 32
        %v1319 = vsel %vm1303, %v385, 32
        %v1320 = vsel %vm1304, %v385, 32
        %v1321 = vsel %vm1305, %v385, 32
        %vm1322 = vcmp.lt.s32.totalorder %v1306, %v1310
        %v1323 = vsel %vm1322, %v1306, %v1310
        %vm1324 = vcmp.lt.s32.totalorder %v1323, %v1314
        %v1325 = vsel %vm1324, %v1323, %v1314
        %vm1326 = vcmp.lt.s32.totalorder %v1325, %v1318
        %v1327 = vsel %vm1326, %v1325, %v1318
        %v1328 = vrot.slane %v1327, 4
        %vm1329 = vcmp.lt.s32.totalorder %v1327, %v1328
        %v1330 = vsel %vm1329, %v1327, %v1328
        %v1331 = vrot.slane %v1330, 2
        %vm1332 = vcmp.lt.s32.totalorder %v1330, %v1331
        %v1333 = vsel %vm1332, %v1330, %v1331
        %v1334 = vrot.slane %v1333, 1
        %vm1335 = vcmp.lt.s32.totalorder %v1333, %v1334
        %v1336 = vsel %vm1335, %v1333, %v1334
        %vm1337 = vcmp.lt.s32.totalorder %v1307, %v1311
        %v1338 = vsel %vm1337, %v1307, %v1311
        %vm1339 = vcmp.lt.s32.totalorder %v1338, %v1315
        %v1340 = vsel %vm1339, %v1338, %v1315
        %vm1341 = vcmp.lt.s32.totalorder %v1340, %v1319
        %v1342 = vsel %vm1341, %v1340, %v1319
        %v1343 = vrot.slane %v1342, 4
        %vm1344 = vcmp.lt.s32.totalorder %v1342, %v1343
        %v1345 = vsel %vm1344, %v1342, %v1343
        %v1346 = vrot.slane %v1345, 2
        %vm1347 = vcmp.lt.s32.totalorder %v1345, %v1346
        %v1348 = vsel %vm1347, %v1345, %v1346
        %v1349 = vrot.slane %v1348, 1
        %vm1350 = vcmp.lt.s32.totalorder %v1348, %v1349
        %v1351 = vsel %vm1350, %v1348, %v1349
        %vm1352 = vcmp.lt.s32.totalorder %v1308, %v1312
        %v1353 = vsel %vm1352, %v1308, %v1312
        %vm1354 = vcmp.lt.s32.totalorder %v1353, %v1316
        %v1355 = vsel %vm1354, %v1353, %v1316
        %vm1356 = vcmp.lt.s32.totalorder %v1355, %v1320
        %v1357 = vsel %vm1356, %v1355, %v1320
        %v1358 = vrot.slane %v1357, 4
        %vm1359 = vcmp.lt.s32.totalorder %v1357, %v1358
        %v1360 = vsel %vm1359, %v1357, %v1358
        %v1361 = vrot.slane %v1360, 2
        %vm1362 = vcmp.lt.s32.totalorder %v1360, %v1361
        %v1363 = vsel %vm1362, %v1360, %v1361
        %v1364 = vrot.slane %v1363, 1
        %vm1365 = vcmp.lt.s32.totalorder %v1363, %v1364
        %v1366 = vsel %vm1365, %v1363, %v1364
        %vm1367 = vcmp.lt.s32.totalorder %v1309, %v1313
        %v1368 = vsel %vm1367, %v1309, %v1313
        %vm1369 = vcmp.lt.s32.totalorder %v1368, %v1317
        %v1370 = vsel %vm1369, %v1368, %v1317
        %vm1371 = vcmp.lt.s32.totalorder %v1370, %v1321
        %v1372 = vsel %vm1371, %v1370, %v1321
        %v1373 = vrot.slane %v1372, 4
        %vm1374 = vcmp.lt.s32.totalorder %v1372, %v1373
        %v1375 = vsel %vm1374, %v1372, %v1373
        %v1376 = vrot.slane %v1375, 2
        %vm1377 = vcmp.lt.s32.totalorder %v1375, %v1376
        %v1378 = vsel %vm1377, %v1375, %v1376
        %v1379 = vrot.slane %v1378, 1
        %vm1380 = vcmp.lt.s32.totalorder %v1378, %v1379
        %v1381 = vsel %vm1380, %v1378, %v1379
        %vm1382 = vcmp.eq.s32.totalorder %v382, %v1336
        %vm1383 = vcmp.eq.s32.totalorder %v382, %v1351
        %vm1384 = vcmp.eq.s32.totalorder %v382, %v1366
        %vm1385 = vcmp.eq.s32.totalorder %v382, %v1381
        %vm1386 = vcmp.eq.s32.totalorder %v383, %v1336
        %vm1387 = vcmp.eq.s32.totalorder %v383, %v1351
        %vm1388 = vcmp.eq.s32.totalorder %v383, %v1366
        %vm1389 = vcmp.eq.s32.totalorder %v383, %v1381
        %vm1390 = vcmp.eq.s32.totalorder %v384, %v1336
        %vm1391 = vcmp.eq.s32.totalorder %v384, %v1351
        %vm1392 = vcmp.eq.s32.totalorder %v384, %v1366
        %vm1393 = vcmp.eq.s32.totalorder %v384, %v1381
        %vm1394 = vcmp.eq.s32.totalorder %v385, %v1336
        %vm1395 = vcmp.eq.s32.totalorder %v385, %v1351
        %vm1396 = vcmp.eq.s32.totalorder %v385, %v1366
        %vm1397 = vcmp.eq.s32.totalorder %v385, %v1381
        %v1398 = vsel %vm1382, 1, 0
        %v1399 = vsel %vm1383, 1, 0
        %v1400 = vsel %vm1384, 1, 0
        %v1401 = vsel %vm1385, 1, 0
        %v1402 = vsel %vm1386, 1, 0
        %v1403 = vsel %vm1387, 1, 0
        %v1404 = vsel %vm1388, 1, 0
        %v1405 = vsel %vm1389, 1, 0
        %v1406 = vsel %vm1390, 1, 0
        %v1407 = vsel %vm1391, 1, 0
        %v1408 = vsel %vm1392, 1, 0
        %v1409 = vsel %vm1393, 1, 0
        %v1410 = vsel %vm1394, 1, 0
        %v1411 = vsel %vm1395, 1, 0
        %v1412 = vsel %vm1396, 1, 0
        %v1413 = vsel %vm1397, 1, 0
        %v1414 = vcvt.s32.f32 %v1398
        %v1415 = vcvt.s32.f32 %v1399
        %v1416 = vcvt.s32.f32 %v1400
        %v1417 = vcvt.s32.f32 %v1401
        %v1418 = vcvt.s32.f32 %v1402
        %v1419 = vcvt.s32.f32 %v1403
        %v1420 = vcvt.s32.f32 %v1404
        %v1421 = vcvt.s32.f32 %v1405
        %v1422 = vcvt.s32.f32 %v1406
        %v1423 = vcvt.s32.f32 %v1407
        %v1424 = vcvt.s32.f32 %v1408
        %v1425 = vcvt.s32.f32 %v1409
        %v1426 = vcvt.s32.f32 %v1410
        %v1427 = vcvt.s32.f32 %v1411
        %v1428 = vcvt.s32.f32 %v1412
        %v1429 = vcvt.s32.f32 %v1413
        %1430 = vmatprep.subr.mxu0 %v1415
        %1431 = vmatpush1.msra.mxu0 %v1414
        %1432 = vmatprep.subr.mxu0 %v1419
        %1433 = vmatpush1.msra.mxu0 %v1418
        %1434 = vmatprep.subr.mxu0 %v1423
        %1435 = vmatpush1.msra.mxu0 %v1422
        %1436 = vmatprep.subr.mxu0 %v1427
        %1437 = vmatpush1.msra.mxu0 %v1426
        %1438 = vmatprep.subr.mxu0 0.0
        %1439 = vmatpush1.msra.mxu0 0.0
        %1440 = vmatprep.subr.mxu0 0.0
        %1441 = vmatpush1.msra.mxu0 0.0
        %1442 = vmatprep.subr.mxu0 0.0
        %1443 = vmatpush1.msra.mxu0 0.0
        %1444 = vmatprep.subr.mxu0 0.0
        %1445 = vmatpush1.msra.mxu0 0.0
        %1446 = vmatprep.subr.mxu0 0.0
        %1447 = vmatpush1.msra.mxu0 0.0
        %1448 = vmatprep.subr.mxu0 0.0
        %1449 = vmatpush1.msra.mxu0 0.0
        %1450 = vmatprep.subr.mxu0 0.0
        %1451 = vmatpush1.msra.mxu0 0.0
        %1452 = vmatprep.subr.mxu0 0.0
        %1453 = vmatpush1.msra.mxu0 0.0
        %1454 = vmatprep.subr.mxu0 0.0
        %1455 = vmatpush1.msra.mxu0 0.0
        %1456 = vmatprep.subr.mxu0 0.0
        %1457 = vmatpush1.msra.mxu0 0.0
        %1458 = vmatprep.subr.mxu0 0.0
        %1459 = vmatpush1.msra.mxu0 0.0
        %1460 = vmatprep.subr.mxu0 0.0
        %1461 = vmatpush1.msra.mxu0 0.0
        %1462 = vmatprep.subr.mxu0 0.0
        %1463 = vmatpush1.msra.mxu0 0.0
        %1464 = vmatprep.subr.mxu0 0.0
        %1465 = vmatpush1.msra.mxu0 0.0
        %1466 = vmatprep.subr.mxu0 0.0
        %1467 = vmatpush1.msra.mxu0 0.0
        %1468 = vmatprep.subr.mxu0 0.0
        %1469 = vmatpush1.msra.mxu0 0.0
        %1470 = vmatprep.subr.mxu0 0.0
        %1471 = vmatpush1.msra.mxu0 0.0
        %1472 = vmatprep.subr.mxu0 0.0
        %1473 = vmatpush1.msra.mxu0 0.0
        %1474 = vmatprep.subr.mxu0 0.0
        %1475 = vmatpush1.msra.mxu0 0.0
        %1476 = vmatprep.subr.mxu0 0.0
        %1477 = vmatpush1.msra.mxu0 0.0
        %1478 = vmatprep.subr.mxu0 0.0
        %1479 = vmatpush1.msra.mxu0 0.0
        %1480 = vmatprep.subr.mxu0 0.0
        %1481 = vmatpush1.msra.mxu0 0.0
        %1482 = vmatprep.subr.mxu0 0.0
        %1483 = vmatpush1.msra.mxu0 0.0
        %1484 = vmatprep.subr.mxu0 0.0
        %1485 = vmatpush1.msra.mxu0 0.0
        %1486 = vmatprep.subr.mxu0 0.0
        %1487 = vmatpush1.msra.mxu0 0.0
        %1488 = vmatprep.subr.mxu0 0.0
        %1489 = vmatpush1.msra.mxu0 0.0
        %1490 = vmatprep.subr.mxu0 0.0
        %1491 = vmatpush1.msra.mxu0 0.0
        %1492 = vmatprep.subr.mxu0 0.0
        %1493 = vmatpush1.msra.mxu0 0.0
        %1494 = vmatprep.mubr.f32.mxu0 0.0
        %1495 = vmatmul.mubr.f32.gmra.mrb[0].mxu0 %v799
        %v1496 = vpop.f32.mrb[0].mxu0
        %v1497 = vadd.f32 0.0, %v1496
        %v1498 = vpop.f32.mrb[0].mxu0
        %v1499 = vadd.f32 0.0, %v1498
        %1500 = vmatprep.mubr.f32.mxu0 0.0
        %1501 = vmatmul.mubr.f32.gmra.mrb[0].mxu0 %v802
        %v1502 = vpop.f32.mrb[0].mxu0
        %v1503 = vadd.f32 0.0, %v1502
        %v1504 = vpop.f32.mrb[0].mxu0
        %v1505 = vadd.f32 0.0, %v1504
        %1506 = vdwg.mxu0
        %1507 = vmatprep.subr.mxu0 %v1417
        %1508 = vmatpush1.msra.mxu0 %v1416
        %1509 = vmatprep.subr.mxu0 %v1421
        %1510 = vmatpush1.msra.mxu0 %v1420
        %1511 = vmatprep.subr.mxu0 %v1425
        %1512 = vmatpush1.msra.mxu0 %v1424
        %1513 = vmatprep.subr.mxu0 %v1429
        %1514 = vmatpush1.msra.mxu0 %v1428
        %1515 = vmatprep.subr.mxu0 0.0
        %1516 = vmatpush1.msra.mxu0 0.0
        %1517 = vmatprep.subr.mxu0 0.0
        %1518 = vmatpush1.msra.mxu0 0.0
        %1519 = vmatprep.subr.mxu0 0.0
        %1520 = vmatpush1.msra.mxu0 0.0
        %1521 = vmatprep.subr.mxu0 0.0
        %1522 = vmatpush1.msra.mxu0 0.0
        %1523 = vmatprep.subr.mxu0 0.0
        %1524 = vmatpush1.msra.mxu0 0.0
        %1525 = vmatprep.subr.mxu0 0.0
        %1526 = vmatpush1.msra.mxu0 0.0
        %1527 = vmatprep.subr.mxu0 0.0
        %1528 = vmatpush1.msra.mxu0 0.0
        %1529 = vmatprep.subr.mxu0 0.0
        %1530 = vmatpush1.msra.mxu0 0.0
        %1531 = vmatprep.subr.mxu0 0.0
        %1532 = vmatpush1.msra.mxu0 0.0
        %1533 = vmatprep.subr.mxu0 0.0
        %1534 = vmatpush1.msra.mxu0 0.0
        %1535 = vmatprep.subr.mxu0 0.0
        %1536 = vmatpush1.msra.mxu0 0.0
        %1537 = vmatprep.subr.mxu0 0.0
        %1538 = vmatpush1.msra.mxu0 0.0
        %1539 = vmatprep.subr.mxu0 0.0
        %1540 = vmatpush1.msra.mxu0 0.0
        %1541 = vmatprep.subr.mxu0 0.0
        %1542 = vmatpush1.msra.mxu0 0.0
        %1543 = vmatprep.subr.mxu0 0.0
        %1544 = vmatpush1.msra.mxu0 0.0
        %1545 = vmatprep.subr.mxu0 0.0
        %1546 = vmatpush1.msra.mxu0 0.0
        %1547 = vmatprep.subr.mxu0 0.0
        %1548 = vmatpush1.msra.mxu0 0.0
        %1549 = vmatprep.subr.mxu0 0.0
        %1550 = vmatpush1.msra.mxu0 0.0
        %1551 = vmatprep.subr.mxu0 0.0
        %1552 = vmatpush1.msra.mxu0 0.0
        %1553 = vmatprep.subr.mxu0 0.0
        %1554 = vmatpush1.msra.mxu0 0.0
        %1555 = vmatprep.subr.mxu0 0.0
        %1556 = vmatpush1.msra.mxu0 0.0
        %1557 = vmatprep.subr.mxu0 0.0
        %1558 = vmatpush1.msra.mxu0 0.0
        %1559 = vmatprep.subr.mxu0 0.0
        %1560 = vmatpush1.msra.mxu0 0.0
        %1561 = vmatprep.subr.mxu0 0.0
        %1562 = vmatpush1.msra.mxu0 0.0
        %1563 = vmatprep.subr.mxu0 0.0
        %1564 = vmatpush1.msra.mxu0 0.0
        %1565 = vmatprep.subr.mxu0 0.0
        %1566 = vmatpush1.msra.mxu0 0.0
        %1567 = vmatprep.subr.mxu0 0.0
        %1568 = vmatpush1.msra.mxu0 0.0
        %1569 = vmatprep.subr.mxu0 0.0
        %1570 = vmatpush1.msra.mxu0 0.0
        %1571 = vmatprep.mubr.f32.mxu0 0.0
        %1572 = vmatmul.mubr.f32.gmra.mrb[0].mxu0 %v799
        %v1573 = vpop.f32.mrb[0].mxu0
        %v1574 = vadd.f32 0.0, %v1573
        %v1575 = vpop.f32.mrb[0].mxu0
        %v1576 = vadd.f32 0.0, %v1575
        %1577 = vmatprep.mubr.f32.mxu0 0.0
        %1578 = vmatmul.mubr.f32.gmra.mrb[0].mxu0 %v802
        %v1579 = vpop.f32.mrb[0].mxu0
        %v1580 = vadd.f32 0.0, %v1579
        %v1581 = vpop.f32.mrb[0].mxu0
        %v1582 = vadd.f32 0.0, %v1581
        %1583 = vdwg.mxu0
        %v1584 = vsub.f32 %v1497, %v1052
        %v1585 = vsub.f32 %v1499, %v1053
        %v1586 = vsub.f32 %v1574, %v1054
        %v1587 = vsub.f32 %v1576, %v1055
        %v1588 = vsub.f32 %v1503, %v1056
        %v1589 = vsub.f32 %v1505, %v1057
        %v1590 = vsub.f32 %v1580, %v1058
        %v1591 = vsub.f32 %v1582, %v1059
        %1592 = vst [vmem:[%s324 + $0x20] sm:$0xff] %v1497
        %1593 = vst [vmem:[%s324 + $0x28] sm:$0xff] %v1499
        %1594 = vst [vmem:[%s324 + $0x30] sm:$0xff] %v1574
        %1595 = vst [vmem:[%s324 + $0x38] sm:$0xff] %v1576
        %1596 = vst [vmem:[%s324 + $0x60] sm:$0xff] %v1503
        %1597 = vst [vmem:[%s324 + $0x68] sm:$0xff] %v1505
        %1598 = vst [vmem:[%s324 + $0x70] sm:$0xff] %v1580
        %1599 = vst [vmem:[%s324 + $0x78] sm:$0xff] %v1582
        %v1600 = vcombine.low %v1336, %v1351
        %v1601 = vcombine.low %v1366, %v1381
        %v1603 = vunpack.c.l.s4 1966171168
        %v1604 = vunpack.c.0.s8 %v1603
        %v1605 = vlaneseq
        %v1606 = vshrl.u32 %v1605, 7
        %v1607 = vsub.s32 %v1604, %v1606
        %v1608 = vrot.slane %v1600, %v1607
        %v1610 = vunpack.c.l.s4 1966171168
        %v1611 = vunpack.c.0.s8 %v1610
        %v1612 = vlaneseq
        %v1613 = vshrl.u32 %v1612, 7
        %v1614 = vsub.s32 %v1611, %v1613
        %v1615 = vrot.slane %v1601, %v1614
        %v1616 = vcombine.low %v1608, %v1615
        %v1618 = vunpack.c.l.s4 1966171168
        %v1619 = vunpack.c.0.s8 %v1618
        %v1620 = vlaneseq
        %v1621 = vshrl.u32 %v1620, 7
        %v1622 = vsub.s32 %v1619, %v1621
        %v1623 = vrot.slane %v1616, %v1622
        %1624 = vst.msk [vmem:[%s331 + $0x4] sm:$0xf] %vm1001, %v1623
        %v1625 = vadd.f32 %v1414, %v1415
        %v1626 = vadd.f32 %v1625, %v1416
        %v1627 = vadd.f32 %v1626, %v1417
        %1628 = vadd.xlane.f32.xlu0 %v1627
        %v1629 = vpop.xlane.xlu0 %1628
        %v1630 = vadd.f32 %v1418, %v1419
        %v1631 = vadd.f32 %v1630, %v1420
        %v1632 = vadd.f32 %v1631, %v1421
        %1633 = vadd.xlane.f32.xlu0 %v1632
        %v1634 = vpop.xlane.xlu0 %1633
        %v1635 = vadd.f32 %v1422, %v1423
        %v1636 = vadd.f32 %v1635, %v1424
        %v1637 = vadd.f32 %v1636, %v1425
        %1638 = vadd.xlane.f32.xlu0 %v1637
        %v1639 = vpop.xlane.xlu0 %1638
        %v1640 = vadd.f32 %v1426, %v1427
        %v1641 = vadd.f32 %v1640, %v1428
        %v1642 = vadd.f32 %v1641, %v1429
        %1643 = vadd.xlane.f32.xlu0 %v1642
        %v1644 = vpop.xlane.xlu0 %1643
        %v1645 = vadd.f32 %v1023, %v1629
        %v1646 = vadd.f32 %v1024, %v1634
        %v1647 = vadd.f32 %v1025, %v1639
        %v1648 = vadd.f32 %v1026, %v1644
        %v1649 = vmul.f32 %v1584, %v1584
        %v1650 = vmul.f32 %v1585, %v1585
        %v1651 = vmul.f32 %v1586, %v1586
        %v1652 = vmul.f32 %v1587, %v1587
        %v1653 = vmul.f32 %v1588, %v1588
        %v1654 = vmul.f32 %v1589, %v1589
        %v1655 = vmul.f32 %v1590, %v1590
        %v1656 = vmul.f32 %v1591, %v1591
        %v1657 = vadd.f32 %v1649, %v1650
        %v1658 = vadd.f32 %v1657, %v1651
        %v1659 = vadd.f32 %v1658, %v1652
        %v1660 = vadd.f32 %v1659, %v1653
        %v1661 = vadd.f32 %v1660, %v1654
        %v1662 = vadd.f32 %v1661, %v1655
        %v1663 = vadd.f32 %v1662, %v1656
        %1664 = vadd.xlane.f32.xlu0 %v1663
        %v1665 = vpop.xlane.xlu0 %1664
        %v1666 = vrot.slane %v1665, 4
        %v1667 = vadd.f32 %v1665, %v1666
        %v1668 = vrot.slane %v1667, 2
        %v1669 = vadd.f32 %v1667, %v1668
        %v1670 = vrot.slane %v1669, 1
        %v1671 = vadd.f32 %v1669, %v1670
        %s1672 = vtos %v1671
        %s1673 = sadd.f32 %s1051, %s1672
        %vm1674 = vcmask 7168
        %1675 = vst.msk [vmem:[%s363] sm:$0xff] %vm1674, %v1645
        %1676 = vst.msk [vmem:[%s363 + $0x8] sm:$0xff] %vm1674, %v1646
        %1677 = vst.msk [vmem:[%s363 + $0x10] sm:$0xff] %vm1674, %v1647
        %1678 = vst.msk [vmem:[%s363 + $0x18] sm:$0xff] %vm1674, %v1648
        %v1679 = vstv %s1673
        %vm1680 = vcmask 0
        %1681 = vst.msk [vmem:[%s370] sm:$0x1] %vm1680, %v1679
        %s1682 = sand.u32 %s141, 1
        %s1683 = scalar_lea.sflag [#allocation4], %s1682
        %s1684 = sand.u32 %s141, 1
        %s1685 = smul.addr %s1684, 128
        %s1686 = scalar_lea.vmem [#allocation5], %s1685
        %s1687 = sand.u32 %s169, 1
        %s1688 = scalar_lea.sflag [#allocation7], %s1687
        %s1689 = sand.u32 %s169, 1
        %s1690 = smul.addr %s1689, 8
        %s1691 = scalar_lea.vmem [#allocation6], %s1690
        %p1692 = scmp.lt.s32.totalorder %s32, 1
        %s1693 = scalar_select %p1692, %s32, 1
        %p1694 = scmp.lt.s32.totalorder %s33, 3
        %s1695 = scalar_select %p1694, %s33, 3
        %s1696 = smul.addr %s1695, 4
        %s1697 = smul.addr %s1693, 16
        %s1698 = sadd.s32 %s1696, %s1697
        %s1699 = smul.addr %s1698, 8
        %s1700 = scalar_lea.vmem %s6, %s1699
        %p1701 = scmp.lt.s32.totalorder %s32, 1
        %s1702 = scalar_select %p1701, %s32, 1
        %p1703 = scmp.lt.s32.totalorder %s33, 3
        %s1704 = scalar_select %p1703, %s33, 3
        %s1705 = smul.addr %s1702, 4
        %s1706 = sadd.s32 %s1704, %s1705
        %s1707 = scalar_lea.vmem %s7, %s1706
        // Predicated region
        $region41: #{tpu_custom_call.1} parent=35 // pred_check
          %p1708 = pneg %p151
        $region42: #{tpu_custom_call.1} parent=35 // pred_check_branch
          %1710 = sbr.rel (%p1708) target = $region44
        $region43: #{tpu_custom_call.1} parent=35 // pred_region
          %s1711 = smul.u32 8, %s33
          %s1713 = ssub.s32 2048, 2048
          %1714 = vsyncadd %s1683, %s1713
          %s1715 = smul.addr %s32, 64
          %s1716 = sadd.s32 %s1711, %s1715
          %s1717 = smul.addr %s1716, 128
          %s1718 = scalar_lea.hbm %s4, %s1717
          %s1719 = sshll.u32 %s1686, 4
          %s1720 = int_to_ptr.vmem [resolvable:$true] %s1719
          %1725 = dma.vmem_to_hbm [thread:$0]  %s1720, 2048, %s1718, %s1683, 1024, 4096, 64
        $region44: #{tpu_custom_call.1} parent=35 // pred_fallthru
          _
        // Predicated region
        $region45: #{tpu_custom_call.1} parent=35 // pred_check
          %p1726 = pneg %p179
        $region46: #{tpu_custom_call.1} parent=35 // pred_check_branch
          %1728 = sbr.rel (%p1726) target = $region48
        $region47: #{tpu_custom_call.1} parent=35 // pred_region
          %s1729 = smul.u32 8, %s33
          %s1731 = ssub.s32 128, 128
          %1732 = vsyncadd %s1688, %s1731
          %s1733 = smul.addr %s32, 32
          %s1734 = sadd.s32 %s1729, %s1733
          %s1735 = smul.addr %s1734, 16
          %s1736 = scalar_lea.hbm %s5, %s1735
          %s1738 = sshll.u32 %s1691, 4
          %s1739 = int_to_ptr.vmem [resolvable:$true] %s1738
          %1741 = dma.vmem_to_hbm [thread:$0]  %s1739, 128, %s1736, %s1688
        $region48: #{tpu_custom_call.1} parent=35 // pred_fallthru
          _
        // Predicated region
        $region49: #{tpu_custom_call.1} parent=35 // pred_check
          %p1742 = pneg %p207
        $region50: #{tpu_custom_call.1} parent=35 // pred_check_branch
          %1744 = sbr.rel (%p1742) target = $region52
        $region51: #{tpu_custom_call.1} parent=35 // pred_region
          _
        $region52: #{tpu_custom_call.1} parent=35 // pred_fallthru
          _
        // Predicated region
        $region53: #{tpu_custom_call.1} parent=35 // pred_check
          %p1745 = pneg %p235
        $region54: #{tpu_custom_call.1} parent=35 // pred_check_branch
          %1747 = sbr.rel (%p1745) target = $region56
        $region55: #{tpu_custom_call.1} parent=35 // pred_region
          _
        $region56: #{tpu_custom_call.1} parent=35 // pred_fallthru
          _
      $region36: #{tpu_custom_call.1} parent=5 // pred_fallthru
        _
      %p1748 = scmp.le.s32.totalorder 2, %s23
      // Predicated region
      $region57: #{tpu_custom_call.1} parent=5 // pred_check
        %p1749 = pneg %p1748
      $region58: #{tpu_custom_call.1} parent=5 // pred_check_branch
        %1751 = sbr.rel (%p1749) target = $region60
      $region59: #{tpu_custom_call.1} parent=5 // pred_region
        %s1752 = ssub.s32 %s23, 2
        // Predicated region
        $region61: #{tpu_custom_call.1} parent=59 // pred_check
          %p1753 = pneg %p157
        $region62: #{tpu_custom_call.1} parent=59 // pred_check_branch
          %1755 = sbr.rel (%p1753) target = $region64
        $region63: #{tpu_custom_call.1} parent=59 // pred_region
          %s1756 = sand.u32 %s142, 1
          %s1757 = scalar_lea.sflag [#allocation4], %s1756
          %s1758 = sand.u32 %s142, 1
          %s1759 = smul.addr %s1758, 128
          %s1760 = scalar_lea.vmem [#allocation5], %s1759
          %1761 = dma.done %s1757, 2048
        $region64: #{tpu_custom_call.1} parent=59 // pred_fallthru
          _
        // Predicated region
        $region65: #{tpu_custom_call.1} parent=59 // pred_check
          %p1762 = pneg %p185
        $region66: #{tpu_custom_call.1} parent=59 // pred_check_branch
          %1764 = sbr.rel (%p1762) target = $region68
        $region67: #{tpu_custom_call.1} parent=59 // pred_region
          %s1765 = sand.u32 %s170, 1
          %s1766 = scalar_lea.sflag [#allocation7], %s1765
          %s1767 = sand.u32 %s170, 1
          %s1768 = smul.addr %s1767, 8
          %s1769 = scalar_lea.vmem [#allocation6], %s1768
          %1770 = dma.done %s1766, 128
        $region68: #{tpu_custom_call.1} parent=59 // pred_fallthru
          _
        // Predicated region
        $region69: #{tpu_custom_call.1} parent=59 // pred_check
          %p1771 = pneg %p213
        $region70: #{tpu_custom_call.1} parent=59 // pred_check_branch
          %1773 = sbr.rel (%p1771) target = $region72
        $region71: #{tpu_custom_call.1} parent=59 // pred_region
          %p1774 = scmp.lt.s32.totalorder %s34, 1
          %s1775 = scalar_select %p1774, %s34, 1
          %p1776 = scmp.lt.s32.totalorder %s35, 3
          %s1777 = scalar_select %p1776, %s35, 3
          %s1778 = smul.addr %s1777, 4
          %s1779 = smul.addr %s1775, 16
          %s1780 = sadd.s32 %s1778, %s1779
          %s1781 = smul.addr %s1780, 8
          %s1782 = scalar_lea.vmem %s6, %s1781
        $region72: #{tpu_custom_call.1} parent=59 // pred_fallthru
          _
        // Predicated region
        $region73: #{tpu_custom_call.1} parent=59 // pred_check
          %p1783 = pneg %p241
        $region74: #{tpu_custom_call.1} parent=59 // pred_check_branch
          %1785 = sbr.rel (%p1783) target = $region76
        $region75: #{tpu_custom_call.1} parent=59 // pred_region
          %p1786 = scmp.lt.s32.totalorder %s34, 1
          %s1787 = scalar_select %p1786, %s34, 1
          %p1788 = scmp.lt.s32.totalorder %s35, 3
          %s1789 = scalar_select %p1788, %s35, 3
          %s1790 = smul.addr %s1787, 4
          %s1791 = sadd.s32 %s1789, %s1790
          %s1792 = scalar_lea.vmem %s7, %s1791
        $region76: #{tpu_custom_call.1} parent=59 // pred_fallthru
          _
      $region60: #{tpu_custom_call.1} parent=5 // pred_fallthru
        _
    $region6: #{tpu_custom_call.1} parent=1 // loop_footer
      %s27 = sadd.s32 1, %s23
    $region7: #{tpu_custom_call.1} parent=1 // loop_footer_branch
      %22 = sbr.rel target = $region3
    $region8: #{tpu_custom_call.1} parent=1 // loop_exit
      _
    %1793 = vsyncpa [#allocation3], 1
    %s1794 = scalar_lea.sflag [#allocation3], 1
    %1795 = vsyncpa %s1794, 1
    %1796 = vsyncpa [#allocation4], 1
    %s1797 = scalar_lea.sflag [#allocation4], 1
    %1798 = vsyncpa %s1797, 1
    %1799 = vsyncpa [#allocation7], 1
    %s1800 = scalar_lea.sflag [#allocation7], 1
    %1801 = vsyncpa %s1800, 1

</llo_original>
